<compile_context>
chip_gen: v7x
topology: tpu7x:2x2x1
jax: 0.10.0
libtpu: 0.0.40
codegen_flags: <defaults>
</compile_context>

<pallas_src>
import functools
import math

import jax
import jax.numpy as jnp
from jax import lax
from jax.experimental import pallas as pl
from jax.experimental.pallas import tpu as pltpu


# ----------------------------------------------------------------------------
# Helpers
# ----------------------------------------------------------------------------
def _round_up(x, m):
    return ((x + m - 1) // m) * m


def _elu_f32(x):
    # exp(min(x,0)) - 1 avoids exp overflow for large positive x (masked by the
    # where anyway); runs on VPU/EUP in f32.
    return jnp.where(x > 0, x, jnp.exp(jnp.minimum(x, 0.0)) - 1.0)


# ----------------------------------------------------------------------------
# Tiled matmul with fused bias + optional ELU prologue/epilogue
# ----------------------------------------------------------------------------
def _matmul_kernel(a_ref, b_ref, bias_ref, o_ref, acc_ref, *, act_in, act_out):
    @pl.when(pl.program_id(2) == 0)
    def _():
        acc_ref[...] = jnp.zeros_like(acc_ref)

    a = a_ref[...]
    if act_in == "elu":
        a = _elu_f32(a.astype(jnp.float32)).astype(a_ref.dtype)
    acc_ref[...] += jnp.dot(a, b_ref[...], preferred_element_type=jnp.float32)

    @pl.when(pl.program_id(2) == pl.num_programs(2) - 1)
    def _():
        y = acc_ref[...] + bias_ref[...]
        if act_out == "elu":
            y = _elu_f32(y)
        o_ref[...] = y.astype(o_ref.dtype)


def pallas_matmul_bias(a, b, bias, act_in=None, act_out=None, out_dtype=jnp.float32):
    """(M,K) @ (K,N) + bias(N,), bf16 operands, f32 accumulation.

    act_in='elu'  -> ELU applied element-wise to A inside the kernel.
    act_out='elu' -> ELU applied to the biased result (fused epilogue).
    """
    M, K = a.shape
    K2, N = b.shape
    assert K == K2
    # Larger tiles than before (roofline: 512-wide M tiles ~85% of HBM BW);
    # full-K blocks whenever K fits so the weights become VMEM-resident and
    # the k axis degenerates to a single step.
    TM = min(512, _round_up(M, 16))
    TN = min(256, _round_up(N, 128))
    TK = min(1024, _round_up(K, 128))
    Mp, Kp, Np = _round_up(M, TM), _round_up(K, TK), _round_up(N, TN)

    a_bf = a.astype(jnp.bfloat16)
    b_bf = b.astype(jnp.bfloat16)
    if (Mp, Kp) != (M, K):
        a_bf = jnp.pad(a_bf, ((0, Mp - M), (0, Kp - K)))
    if (Kp, Np) != (K, N):
        b_bf = jnp.pad(b_bf, ((0, Kp - K), (0, Np - N)))
    bias_p = bias.reshape(1, N).astype(jnp.float32)
    if Np != N:
        bias_p = jnp.pad(bias_p, ((0, 0), (0, Np - N)))

    out = pl.pallas_call(
        functools.partial(_matmul_kernel, act_in=act_in, act_out=act_out),
        out_shape=jax.ShapeDtypeStruct((Mp, Np), out_dtype),
        grid=(Mp // TM, Np // TN, Kp // TK),
        in_specs=[
            pl.BlockSpec((TM, TK), lambda i, j, k: (i, k)),
            pl.BlockSpec((TK, TN), lambda i, j, k: (k, j)),
            pl.BlockSpec((1, TN), lambda i, j, k: (0, j)),
        ],
        out_specs=pl.BlockSpec((TM, TN), lambda i, j, k: (i, j)),
        scratch_shapes=[pltpu.VMEM((TM, TN), jnp.float32)],
        compiler_params=pltpu.CompilerParams(
            dimension_semantics=("parallel", "parallel", "arbitrary"),
        ),
    )(a_bf, b_bf, bias_p)
    if (Mp, Np) != (M, N):
        out = out[:M, :N]
    return out


# ----------------------------------------------------------------------------
# Stride-1 conv kernel: per-tap accumulation in-kernel (no K-fold im2col)
# ----------------------------------------------------------------------------
def _conv_s1_kernel(x_ref, h_ref, w_ref, b_ref, o_ref, *, ktaps, dil, act_in,
                    act_out=None):
    tm = x_ref.shape[1]
    # main block + small halo of next block, concatenated along time (sublanes)
    xf = jnp.concatenate(
        [x_ref[0].astype(jnp.float32), h_ref[0, 0].astype(jnp.float32)], axis=0)
    if act_in == "elu":
        xf = _elu_f32(xf)
    acc = jnp.zeros((tm, o_ref.shape[-1]), jnp.float32)
    for k in range(ktaps):
        xs = xf[k * dil: k * dil + tm, :].astype(jnp.bfloat16)
        acc = acc + jnp.dot(xs, w_ref[k], preferred_element_type=jnp.float32)
    y = acc + b_ref[...]
    if act_out == "elu":
        y = _elu_f32(y)
    o_ref[0] = y.astype(o_ref.dtype)


def pallas_conv1d_s1(x_padded, w, b, dilation, t_out, act_in, out_dtype):
    """Stride-1 conv on already-padded input. x:(B,Cin,Tp), w:(Cout,Cin,K)."""
    B, Cin, Tp = x_padded.shape
    Cout, _, K = w.shape
    halo = (K - 1) * dilation
    halo_p = max(16, _round_up(halo, 16))
    TM = min(512, max(_round_up(t_out, 16), halo_p))
    nt = (t_out + TM - 1) // TM
    ext_len = nt * TM + halo_p

    x_t = jnp.transpose(x_padded, (0, 2, 1)).astype(jnp.bfloat16)   # (B, Tp, Cin)
    x_ext = jnp.pad(x_t, ((0, 0), (0, ext_len - Tp), (0, 0)))
    # halo_arr[b, i] = x_ext[b, (i+1)*TM : (i+1)*TM + halo_p]  (halo_p <= TM)
    xs = x_ext[:, TM:TM + nt * TM, :]
    xs = jnp.pad(xs, ((0, 0), (0, nt * TM - xs.shape[1]), (0, 0)))
    halo_arr = xs.reshape(B, nt, TM, Cin)[:, :, :halo_p, :]

    Coutp = Cout if Cout < 128 else _round_up(Cout, 128)
    TN = min(256, Coutp)
    w_k = jnp.transpose(w, (2, 1, 0)).astype(jnp.bfloat16)          # (K, Cin, Cout)
    if Coutp != Cout:
        w_k = jnp.pad(w_k, ((0, 0), (0, 0), (0, Coutp - Cout)))
    bias_p = b.reshape(1, Cout).astype(jnp.float32)
    if Coutp != Cout:
        bias_p = jnp.pad(bias_p, ((0, 0), (0, Coutp - Cout)))

    out = pl.pallas_call(
        functools.partial(_conv_s1_kernel, ktaps=K, dil=dilation, act_in=act_in),
        out_shape=jax.ShapeDtypeStruct((B, nt * TM, Coutp), out_dtype),
        grid=(B, nt, Coutp // TN),
        in_specs=[
            pl.BlockSpec((1, TM, Cin), lambda bb, i, j: (bb, i, 0)),
            pl.BlockSpec((1, 1, halo_p, Cin), lambda bb, i, j: (bb, i, 0, 0)),
            pl.BlockSpec((K, Cin, TN), lambda bb, i, j: (0, 0, j)),
            pl.BlockSpec((1, TN), lambda bb, i, j: (0, j)),
        ],
        out_specs=pl.BlockSpec((1, TM, TN), lambda bb, i, j: (bb, i, j)),
        compiler_params=pltpu.CompilerParams(
            dimension_semantics=("parallel", "parallel", "parallel"),
        ),
    )(x_ext, halo_arr, w_k, bias_p)
    out = out[:, :t_out, :Cout]
    return jnp.transpose(out, (0, 2, 1))


# ----------------------------------------------------------------------------
# LSTM recurrence kernel: fused gates, bf16 dots, time-chunked grid with
# h/c state carried in VMEM scratch across grid steps.
# ----------------------------------------------------------------------------
def _lstm_kernel(gx_ref, whh_ref, y_ref, h_ref, c_ref):
    TC = gx_ref.shape[0]
    D = gx_ref.shape[1]
    H4 = gx_ref.shape[3]
    H = H4 // 4

    @pl.when(pl.program_id(0) == 0)
    def _():
        h_ref[...] = jnp.zeros_like(h_ref)
        c_ref[...] = jnp.zeros_like(c_ref)

    def step(t, carry):
        hs, cs = carry
        gxt = gx_ref[t]                              # (D, B, 4H) bf16
        new_hs, new_cs = [], []
        for d in range(D):
            # single fused (B,H)@(H,4H) recurrent dot per direction (bf16 in,
            # f32 accumulation).
            rec = jnp.dot(hs[d].astype(jnp.bfloat16), whh_ref[d],
                          preferred_element_type=jnp.float32)
            gates = gxt[d].astype(jnp.float32) + rec  # (B, 4H)
            i_g = jax.nn.sigmoid(gates[:, 0 * H:1 * H])
            f_g = jax.nn.sigmoid(gates[:, 1 * H:2 * H])
            g_g = jnp.tanh(gates[:, 2 * H:3 * H])
            o_g = jax.nn.sigmoid(gates[:, 3 * H:4 * H])
            c_new = f_g * cs[d] + i_g * g_g
            h_new = o_g * jnp.tanh(c_new)
            new_hs.append(h_new)
            new_cs.append(c_new)
        y_ref[t] = jnp.stack(new_hs, axis=0).astype(y_ref.dtype)
        return tuple(new_hs), tuple(new_cs)

    init = (tuple(h_ref[d] for d in range(D)),
            tuple(c_ref[d] for d in range(D)))
    hs, cs = lax.fori_loop(0, TC, step, init)
    for d in range(D):
        h_ref[d] = hs[d]
        c_ref[d] = cs[d]
    # TODO(synk): hold W_hh in the MXU weight registers across timesteps via
    # pltpu.matmul_push_rhs / matmul_acc_lhs / matmul_pop.


def pallas_lstm(gx, whh, out_dtype=jnp.bfloat16):
    """gx: (T, D, B, 4H) precomputed input gates (bf16); whh: (D, H, 4H)."""
    T, D, B, H4 = gx.shape
    H = H4 // 4
    TC = min(128, _round_up(T, 8))
    Tp = _round_up(T, TC)
    gx = gx.astype(jnp.bfloat16)
    if Tp != T:
        gx = jnp.pad(gx, ((0, Tp - T), (0, 0), (0, 0), (0, 0)))
    y = pl.pallas_call(
        _lstm_kernel,
        out_shape=jax.ShapeDtypeStruct((Tp, D, B, H), out_dtype),
        grid=(Tp // TC,),
        in_specs=[
            pl.BlockSpec((TC, D, B, H4), lambda c: (c, 0, 0, 0)),
            pl.BlockSpec((D, H, H4), lambda c: (0, 0, 0)),
        ],
        out_specs=pl.BlockSpec((TC, D, B, H), lambda c: (c, 0, 0, 0)),
        scratch_shapes=[
            pltpu.VMEM((D, B, H), jnp.float32),   # h state
            pltpu.VMEM((D, B, H), jnp.float32),   # c state
        ],
        compiler_params=pltpu.CompilerParams(dimension_semantics=("arbitrary",)),
    )(gx, whh.astype(jnp.bfloat16))
    return y[:T]


# ----------------------------------------------------------------------------
# Fused residual vector quantizer (all n_q stages in one kernel)
# ----------------------------------------------------------------------------
def _rvq_kernel(x_ref, cb_ref, qout_ref, qsel_ref, codes_ref, loss_ref,
                *, n_q, m_real, layers):
    i = pl.program_id(0)
    x = x_ref[...]                                          # (TM, D) f32
    TM = x.shape[0]
    Kc = cb_ref.shape[1]
    row = lax.broadcasted_iota(jnp.int32, (TM, 1), 0) + i * TM
    valid = (row < m_real).astype(jnp.float32)              # mask padded rows
    code_cols = lax.broadcasted_iota(jnp.int32, codes_ref.shape, 1)

    residual = x
    qout = jnp.zeros_like(x)
    codes_slab = jnp.zeros(codes_ref.shape, jnp.int32)
    loss_vals = []
    q_stages = {}
    for s in range(n_q):
        cb_bf = cb_ref[s]                                   # (Kc, D) bf16
        cb_f = cb_bf.astype(jnp.float32)
        # dist up to a per-row constant: |c|^2 - 2 x.c (x^2 dropped; argmin
        # unchanged).  Distance dot in bf16 (argmin only), f32 accumulation.
        xc = lax.dot_general(residual.astype(jnp.bfloat16), cb_bf,
                             (((1,), (1,)), ((), ())),
                             preferred_element_type=jnp.float32)  # (TM, Kc)
        c2 = jnp.sum(cb_f * cb_f, axis=-1)[None, :]
        dist = c2 - 2.0 * xc
        min_d = jnp.min(dist, axis=-1, keepdims=True)
        ids = lax.broadcasted_iota(jnp.int32, dist.shape, 1)
        masked = jnp.where(dist <= min_d, ids, Kc)
        idx = jnp.min(masked, axis=-1, keepdims=True)       # first-tie argmin
        onehot = (ids == idx).astype(jnp.bfloat16)
        # Lookup from the bf16 codebook (codewords bf16-rounded; acceptable for
        # inference, halves codebook VMEM/DMA vs f32).
        q = jnp.dot(onehot, cb_bf, preferred_element_type=jnp.float32)
        diff = (q - residual) * valid
        loss_vals.append(jnp.sum(diff * diff))
        codes_slab = jnp.where(code_cols == s,
                               jnp.broadcast_to(idx, codes_slab.shape),
                               codes_slab)
        if s in layers:
            q_stages[s] = q
        residual = residual - q
        qout = qout + q

    qout_ref[...] = qout
    codes_ref[...] = codes_slab
    # Always initialize every selected-layer slab (no stale VMEM).
    if len(layers) == 0:
        qsel_ref[0] = jnp.zeros_like(x)
    else:
        for j, l in enumerate(layers):
            if 0 <= l < n_q:
                qsel_ref[j] = q_stages[l]
            else:
                qsel_ref[j] = jnp.zeros_like(x)
    # Per-row-block partial losses (summed outside) so this grid axis can be
    # 'parallel' (v7x dual TensorCore).
    lcol = lax.broadcasted_iota(jnp.int32, loss_ref.shape, 2)
    loss_slab = jnp.zeros(loss_ref.shape, jnp.float32)
    for s in range(n_q):
        loss_slab = jnp.where(lcol == s, loss_vals[s], loss_slab)
    loss_ref[...] = loss_slab


def pallas_rvq(e, codebooks, n_q, layers):
    """e: (B, D, T).  Returns quantized (B,D,T), codes (n_q,B,T), losses (n_q,),
    list of per-requested-layer quantized tensors."""
    B, D, T = e.shape
    M = B * T
    Kc = codebooks[0].shape[0]
    assert n_q <= 128, "lane-dense code slab assumes n_q <= 128"
    assert all(0 <= l < n_q for l in layers), "layers must be subset of range(n_q)"
    x = jnp.transpose(e, (0, 2, 1)).reshape(M, D).astype(jnp.float32)
    TM = min(512, _round_up(M, 8))
    Mp = _round_up(M, TM)
    nb = Mp // TM
    if Mp != M:
        x = jnp.pad(x, ((0, Mp - M), (0, 0)))
    cb = jnp.stack([c.astype(jnp.bfloat16) for c in codebooks[:n_q]], axis=0)
    nl = max(len(layers), 1)
    # TODO(synk): at production sizes add a per-stage grid axis (residual in
    # VMEM scratch) instead of keeping all n_q codebooks resident.

    q_out, q_sel, codes, loss = pl.pallas_call(
        functools.partial(_rvq_kernel, n_q=n_q, m_real=M, layers=tuple(layers)),
        out_shape=(
            jax.ShapeDtypeStruct((Mp, D), jnp.float32),
            jax.ShapeDtypeStruct((nl, Mp, D), jnp.float32),
            jax.ShapeDtypeStruct((Mp, 128), jnp.int32),      # lane-dense codes
            jax.ShapeDtypeStruct((nb, 8, 128), jnp.float32),  # per-block losses
        ),
        grid=(nb,),
        in_specs=[
            pl.BlockSpec((TM, D), lambda i: (i, 0)),
            pl.BlockSpec((n_q, Kc, D), lambda i: (0, 0, 0)),
        ],
        out_specs=(
            pl.BlockSpec((TM, D), lambda i: (i, 0)),
            pl.BlockSpec((nl, TM, D), lambda i: (0, i, 0)),
            pl.BlockSpec((TM, 128), lambda i: (i, 0)),
            pl.BlockSpec((1, 8, 128), lambda i: (i, 0, 0)),
        ),
        compiler_params=pltpu.CompilerParams(dimension_semantics=("parallel",)),
    )(x, cb)

    quantized = jnp.transpose(q_out[:M].reshape(B, T, D), (0, 2, 1))
    codes_arr = jnp.transpose(codes[:M, :n_q].reshape(B, T, n_q), (2, 0, 1))
    losses = loss.sum(axis=0)[0, :n_q] / float(M * D)
    qlist = [jnp.transpose(q_sel[j, :M].reshape(B, T, D), (0, 2, 1))
             for j in range(len(layers))]
    return quantized, codes_arr, losses, qlist


# ----------------------------------------------------------------------------
# Conv glue (padding / overlap-add in JAX, compute in Pallas)
# ----------------------------------------------------------------------------
def _pad1d_reflect(x, pleft, pright):
    """EnCodec pad1d semantics: zero-extend first if input is too short for
    reflect padding, then trim the extension back off."""
    if pleft == 0 and pright == 0:
        return x
    T = x.shape[-1]
    max_pad = max(pleft, pright)
    extra = 0
    if T <= max_pad:
        extra = max_pad - T + 1
        x = jnp.pad(x, ((0, 0), (0, 0), (0, extra)))
    x = jnp.pad(x, ((0, 0), (0, 0), (pleft, pright)), mode="reflect")
    if extra > 0:
        x = x[:, :, : x.shape[-1] - extra]
    return x


def conv1d(x, w, b, stride=1, dilation=1, act_in=None, out_dtype=jnp.bfloat16):
    """SConv1d-style (non-causal, reflect pad). x:(B,Cin,T), w:(Cout,Cin,K)."""
    B, Cin, T = x.shape
    Cout, _, K = w.shape
    eff_k = (K - 1) * dilation + 1
    padding_total = eff_k - stride
    n_frames = (T - eff_k + padding_total) / stride + 1
    ideal = (math.ceil(n_frames) - 1) * stride + (eff_k - padding_total)
    extra = max(ideal - T, 0)
    pr = padding_total // 2
    pleft = padding_total - pr
    x = _pad1d_reflect(x, pleft, pr + extra)
    Tp = x.shape[-1]
    T_out = (Tp - eff_k) // stride + 1

    if stride == 1 and K > 1:
        # Per-tap accumulation inside the kernel: no K-fold im2col in HBM.
        return pallas_conv1d_s1(x, w, b, dilation, T_out, act_in, out_dtype)

    if stride == 1 and K == 1:
        xf = jnp.transpose(x, (0, 2, 1)).reshape(B * Tp, Cin)
        wmat = w.reshape(Cout, Cin).T
        out = pallas_matmul_bias(xf, wmat, b, act_in=act_in, out_dtype=out_dtype)
        return jnp.transpose(out.reshape(B, Tp, Cout), (0, 2, 1))

    # Strided downsample conv: im2col (duplication factor only K/stride = 2).
    # TODO(synk): per-tap accumulation for strided convs needs strided-window
    # BlockSpecs; kept as im2col glue.
    idx_t = jnp.arange(T_out)[:, None] * stride + jnp.arange(K)[None, :] * dilation
    patches = x[:, :, idx_t]                               # (B, Cin, T_out, K)
    patches = jnp.transpose(patches, (0, 2, 1, 3)).reshape(B * T_out, Cin * K)
    wmat = jnp.transpose(w, (1, 2, 0)).reshape(Cin * K, Cout)
    out = pallas_matmul_bias(patches, wmat, b, act_in=act_in, out_dtype=out_dtype)
    return jnp.transpose(out.reshape(B, T_out, Cout), (0, 2, 1))


def conv_transpose1d(x, w, b, stride, act_in=None, out_dtype=jnp.bfloat16):
    """SConvTranspose1d (non-causal trim). x:(B,Cin,T), w:(Cin,Cout,K)."""
    B, Cin, T = x.shape
    _, Cout, K = w.shape
    xf = jnp.transpose(x, (0, 2, 1)).reshape(B * T, Cin)
    wmat = w.reshape(Cin, Cout * K)
    y = pallas_matmul_bias(xf, wmat, jnp.zeros((Cout * K,), jnp.float32),
                           act_in=act_in)
    y = y.reshape(B, T, Cout, K)
    T_full = (T - 1) * stride + K
    if K % stride == 0:
        # Phase-decomposed overlap-add: K//stride shifted adds (2 in SEANet).
        J = K // stride
        yj = jnp.transpose(y.reshape(B, T, Cout, J, stride), (0, 2, 1, 3, 4))
        parts = []
        for j in range(J):
            parts.append(jnp.pad(yj[:, :, :, j, :],
                                 ((0, 0), (0, 0), (j, J - 1 - j), (0, 0))))
        out = sum(parts).reshape(B, Cout, T_full)
    else:
        out = jnp.zeros((B, Cout, T_full), jnp.float32)
        for k in range(K):
            out = out.at[:, :, k: k + (T - 1) * stride + 1: stride].add(
                jnp.transpose(y[:, :, :, k], (0, 2, 1)))
    out = out + b[None, :, None]
    padding_total = K - stride
    pr = padding_total // 2
    pleft = padding_total - pr
    return out[:, :, pleft: T_full - pr].astype(out_dtype)


# ----------------------------------------------------------------------------
# Parameter construction (deterministic synthetic weights)
# ----------------------------------------------------------------------------
class KeyGen:
    def __init__(self, key):
        self.key = key

    def next(self):
        self.key, sub = jax.random.split(self.key)
        return sub


def init_param(keys, shape, scale=0.1):
    return scale * jax.random.normal(keys.next(), shape, dtype=jnp.float32)


def make_conv(keys, cin, cout, k):
    return {"w": init_param(keys, (cout, cin, k)), "b": init_param(keys, (cout,))}


def make_resblock(keys, dim, kres, dilation, compress=2, true_skip=False):
    hidden = max(dim // compress, 1)
    return {
        "dil": dilation,
        "conv1": make_conv(keys, dim, hidden, kres),
        "conv2": make_conv(keys, hidden, dim, 1),
        "shortcut": None if true_skip else make_conv(keys, dim, dim, 1),
    }


def make_lstm(keys, dim, num_layers, bidirectional):
    layers = []
    num_dir = 2 if bidirectional else 1
    in_dim = dim
    for _ in range(num_layers):
        dirs = []
        for _ in range(num_dir):
            dirs.append(
                {
                    "w_ih": init_param(keys, (in_dim, 4 * dim)),
                    "w_hh": init_param(keys, (dim, 4 * dim)),
                    "b": init_param(keys, (4 * dim,)),  # b_ih + b_hh folded
                }
            )
        layers.append(dirs)
        in_dim = dim * num_dir
    return {"layers": layers, "bidirectional": bidirectional, "dim": dim}


def build_params(key, cfg):
    keys = KeyGen(key)
    n_filters = cfg["n_filters"]
    dimension = cfg["dimension"]
    strides = cfg["strides"]
    lstm_layers = cfg["lstm_layers"]
    bidirectional = cfg["bidirectional"]
    dilation_base = cfg["dilation_base"]
    kres = cfg["residual_kernel_size"]
    n_res = cfg["n_residual_layers"]
    n_q = cfg["n_q"]
    sem_dim = cfg["semantic_dimension"]
    bins = cfg["codebook_size"]
    channels = 1

    # ----- SEANet encoder (ratios reversed, as in encodec) -----
    mult = 1
    enc = {"conv_in": make_conv(keys, channels, mult * n_filters, 7), "stages": []}
    for ratio in reversed(strides):
        stage = {"stride": ratio, "resblocks": []}
        for j in range(n_res):
            stage["resblocks"].append(
                make_resblock(keys, mult * n_filters, kres, dilation_base ** j)
            )
        stage["down"] = make_conv(keys, mult * n_filters, mult * n_filters * 2, ratio * 2)
        enc["stages"].append(stage)
        mult *= 2
    enc["lstm"] = make_lstm(keys, mult * n_filters, lstm_layers, bidirectional)
    enc_out_in = mult * n_filters * (2 if bidirectional else 1)
    enc["conv_out"] = make_conv(keys, enc_out_in, dimension, 7)

    # ----- SEANet decoder -----
    mult = 2 ** len(strides)
    dec = {"conv_in": make_conv(keys, dimension, mult * n_filters, 7)}
    dec["lstm"] = make_lstm(keys, mult * n_filters, lstm_layers, False)
    dec["stages"] = []
    for ratio in strides:
        stage = {"stride": ratio}
        stage["up"] = {
            "w": init_param(keys, (mult * n_filters, mult * n_filters // 2, ratio * 2)),
            "b": init_param(keys, (mult * n_filters // 2,)),
        }
        stage["resblocks"] = [
            make_resblock(keys, mult * n_filters // 2, kres, dilation_base ** j)
            for j in range(n_res)
        ]
        dec["stages"].append(stage)
        mult //= 2
    dec["conv_out"] = make_conv(keys, n_filters, channels, 7)

    # ----- RVQ codebooks + semantic transform -----
    codebooks = [init_param(keys, (bins, dimension)) for _ in range(n_q)]
    transform = None
    if dimension != sem_dim:
        transform = {
            "w": init_param(keys, (dimension, sem_dim)),
            "b": init_param(keys, (sem_dim,)),
        }
    return {
        "encoder": enc,
        "decoder": dec,
        "codebooks": codebooks,
        "transform": transform,
        "n_q": n_q,
    }


# ----------------------------------------------------------------------------
# Forward-pass assembly
# ----------------------------------------------------------------------------
def apply_resblock(p, x):
    # ELU fused as prologue of each conv (same math as act->conv).
    y = conv1d(x, p["conv1"]["w"], p["conv1"]["b"], stride=1, dilation=p["dil"],
               act_in="elu")
    y = conv1d(y, p["conv2"]["w"], p["conv2"]["b"], stride=1, dilation=1,
               act_in="elu")
    if p["shortcut"] is not None:
        sc = conv1d(x, p["shortcut"]["w"], p["shortcut"]["b"], stride=1, dilation=1)
    else:
        sc = x
    return sc + y


def apply_slstm(p, x):
    # x: (B, C, T) -> (T, B, C); skip connection as in SpeechTokenizer's SLSTM.
    inp = jnp.transpose(x, (2, 0, 1))
    T, B, _ = inp.shape
    H = p["dim"]
    num_dir = 2 if p["bidirectional"] else 1
    cur = inp
    for layer in p["layers"]:
        Din = cur.shape[-1]
        # Hoisted input projection for all directions in one tiled matmul.
        w_cat = jnp.concatenate([d["w_ih"] for d in layer], axis=1)
        b_cat = jnp.concatenate([d["b"] for d in layer], axis=0)
        proj = pallas_matmul_bias(cur.reshape(T * B, Din), w_cat, b_cat,
                                  out_dtype=jnp.bfloat16)
        proj = proj.reshape(T, B, num_dir, 4 * H)
        gx = jnp.transpose(proj, (0, 2, 1, 3))      # (T, D, B, 4H)
        if num_dir == 2:
            # Reverse time for the backward stream.
            gx = jnp.concatenate([gx[:, :1], gx[:, 1:][::-1]], axis=1)
        whh = jnp.stack([d["w_hh"] for d in layer], axis=0)   # (D, H, 4H)
        y = pallas_lstm(gx, whh, out_dtype=jnp.bfloat16)      # (T, D, B, H)
        if num_dir == 2:
            cur = jnp.concatenate([y[:, 0], y[:, 1][::-1]], axis=-1)
        else:
            cur = y[:, 0]
    skip = jnp.tile(inp, (1, 1, 2)) if p["bidirectional"] else inp
    out = cur + skip
    return jnp.transpose(out, (1, 2, 0))


def apply_encoder(p, x):
    y = conv1d(x, p["conv_in"]["w"], p["conv_in"]["b"])
    for stage in p["stages"]:
        for rb in stage["resblocks"]:
            y = apply_resblock(rb, y)
        y = conv1d(y, stage["down"]["w"], stage["down"]["b"],
                   stride=stage["stride"], act_in="elu")
    y = apply_slstm(p["lstm"], y)
    y = conv1d(y, p["conv_out"]["w"], p["conv_out"]["b"], act_in="elu",
               out_dtype=jnp.float32)   # RVQ consumes f32
    return y


def apply_decoder(p, x):
    y = conv1d(x, p["conv_in"]["w"], p["conv_in"]["b"])
    y = apply_slstm(p["lstm"], y)
    for stage in p["stages"]:
        y = conv_transpose1d(y, stage["up"]["w"], stage["up"]["b"],
                             stride=stage["stride"], act_in="elu")
        for rb in stage["resblocks"]:
            y = apply_resblock(rb, y)
    y = conv1d(y, p["conv_out"]["w"], p["conv_out"]["b"], act_in="elu",
               out_dtype=jnp.float32)   # final wav in f32
    return y


def speech_tokenizer_forward(params, x, n_q=None, layers=(0,)):
    """Mirrors SpeechTokenizer.forward: returns (o, commit_loss, feature, quantized_list[1:])."""
    n_q = n_q if n_q else params["n_q"]
    e = apply_encoder(params["encoder"], x)
    quantized, codes, commit_loss, qlist = pallas_rvq(
        e, params["codebooks"], n_q, list(layers)
    )
    feature = jnp.transpose(qlist[0], (0, 2, 1))  # 'b d t -> b t d'
    if params["transform"] is not None:
        B, T, D = feature.shape
        feature = pallas_matmul_bias(
            feature.reshape(B * T, D), params["transform"]["w"], params["transform"]["b"]
        ).reshape(B, T, -1)
    o = apply_decoder(params["decoder"], quantized)
    return o, commit_loss, feature, qlist[1:]


# TODO(synk): weight-norm parametrization of SConv1d and EMA codebook updates /
# straight-through estimator are training-time details; only the inference
# value path is reproduced here.


# ----------------------------------------------------------------------------
if __name__ == "__main__":
    cfg = dict(
        n_filters=4,
        dimension=32,
        strides=[2, 2],
        lstm_layers=1,
        bidirectional=True,
        dilation_base=2,
        residual_kernel_size=3,
        n_residual_layers=1,
        activation="ELU",
        sample_rate=16000,
        n_q=2,
        semantic_dimension=16,
        codebook_size=32,
    )
    key = jax.random.PRNGKey(0)
    pkey, xkey = jax.random.split(key)
    params = build_params(pkey, cfg)
    x = jax.random.normal(xkey, (2, 1, 64), dtype=jnp.float32)  # (B, C, T) wav

    o, commit_loss, feature, rest = speech_tokenizer_forward(params, x)
    o = jax.block_until_ready(o)
    commit_loss = jax.block_until_ready(commit_loss)
    feature = jax.block_until_ready(feature)

    assert o.shape == (2, 1, 64), o.shape
    assert commit_loss.shape == (cfg["n_q"],), commit_loss.shape
    assert feature.shape == (2, 16, cfg["semantic_dimension"]), feature.shape
    assert len(rest) == 0
    assert bool(jnp.isfinite(o).all())
    assert bool(jnp.isfinite(commit_loss).all())
    print("KERNEL_OK")
</pallas_src>

<mosaic_0001>
module attributes {stable_mosaic.version = 11 : i64} {
  func.func @_conv_s1_kernel(%arg0: i32, %arg1: i32, %arg2: i32, %arg3: memref<1x64x1xbf16, #tpu.memory_space<vmem>>, %arg4: memref<1x1x16x1xbf16, #tpu.memory_space<vmem>>, %arg5: memref<7x1x4xbf16, #tpu.memory_space<vmem>>, %arg6: memref<1x4xf32, #tpu.memory_space<vmem>>, %arg7: memref<1x64x4xbf16, #tpu.memory_space<vmem>>) attributes {dimension_semantics = [#tpu.dimension_semantics<parallel>, #tpu.dimension_semantics<parallel>, #tpu.dimension_semantics<parallel>], iteration_bounds = array<i64: 2, 1, 1>, scalar_prefetch = 0 : i64, scratch_operands = 0 : i64, tpu.core_type = #tpu.core_type<tc>, window_params = [{transform_indices = @transform_0, window_bounds = array<i64: 1, 64, 1>}, {transform_indices = @transform_1, window_bounds = array<i64: 1, 1, 16, 1>}, {transform_indices = @transform_2, window_bounds = array<i64: 7, 1, 4>}, {transform_indices = @transform_3, window_bounds = array<i64: 1, 4>}, {transform_indices = @transform_4, window_bounds = array<i64: 1, 64, 4>}]} {
    %c0 = arith.constant 0 : index
    %c0_0 = arith.constant 0 : index
    %c0_1 = arith.constant 0 : index
    %0 = vector.load %arg3[%c0, %c0_0, %c0_1] : memref<1x64x1xbf16, #tpu.memory_space<vmem>>, vector<1x64x1xbf16>
    %1 = vector.shape_cast %0 : vector<1x64x1xbf16> to vector<64x1xbf16>
    %2 = arith.extf %1 : vector<64x1xbf16> to vector<64x1xf32>
    %c0_2 = arith.constant 0 : index
    %c0_3 = arith.constant 0 : index
    %c0_4 = arith.constant 0 : index
    %c0_5 = arith.constant 0 : index
    %3 = vector.load %arg4[%c0_2, %c0_3, %c0_4, %c0_5] : memref<1x1x16x1xbf16, #tpu.memory_space<vmem>>, vector<1x1x16x1xbf16>
    %4 = vector.shape_cast %3 : vector<1x1x16x1xbf16> to vector<16x1xbf16>
    %5 = arith.extf %4 : vector<16x1xbf16> to vector<16x1xf32>
    %6 = tpu.concatenate %2, %5 in 0 : vector<64x1xf32>, vector<16x1xf32> -> vector<80x1xf32>
    %cst = arith.constant 0.000000e+00 : f32
    %7 = vector.broadcast %cst : f32 to vector<64x4xf32>
    %8 = vector.extract_strided_slice %6 {offsets = [0, 0], sizes = [64, 1], strides = [1, 1]} : vector<80x1xf32> to vector<64x1xf32>
    %9 = arith.truncf %8 : vector<64x1xf32> to vector<64x1xbf16>
    %c0_6 = arith.constant 0 : index
    %c0_7 = arith.constant 0 : index
    %c0_8 = arith.constant 0 : index
    %10 = vector.load %arg5[%c0_6, %c0_7, %c0_8] : memref<7x1x4xbf16, #tpu.memory_space<vmem>>, vector<1x1x4xbf16>
    %11 = vector.shape_cast %10 : vector<1x1x4xbf16> to vector<1x4xbf16>
    %cst_9 = arith.constant dense<0.000000e+00> : vector<64x4xf32>
    %12 = tpu.matmul %9, %11, %cst_9 {dimension_numbers = #tpu.dot_dimension_numbers<[1], [0], [0], [1], [0, 0, 1, 1], [], []>} : vector<64x1xbf16>, vector<1x4xbf16>, vector<64x4xf32> -> vector<64x4xf32>
    %13 = arith.addf %7, %12 : vector<64x4xf32>
    %14 = vector.extract_strided_slice %6 {offsets = [1, 0], sizes = [64, 1], strides = [1, 1]} : vector<80x1xf32> to vector<64x1xf32>
    %15 = arith.truncf %14 : vector<64x1xf32> to vector<64x1xbf16>
    %c1 = arith.constant 1 : index
    %c0_10 = arith.constant 0 : index
    %c0_11 = arith.constant 0 : index
    %16 = vector.load %arg5[%c1, %c0_10, %c0_11] : memref<7x1x4xbf16, #tpu.memory_space<vmem>>, vector<1x1x4xbf16>
    %17 = vector.shape_cast %16 : vector<1x1x4xbf16> to vector<1x4xbf16>
    %cst_12 = arith.constant dense<0.000000e+00> : vector<64x4xf32>
    %18 = tpu.matmul %15, %17, %cst_12 {dimension_numbers = #tpu.dot_dimension_numbers<[1], [0], [0], [1], [0, 0, 1, 1], [], []>} : vector<64x1xbf16>, vector<1x4xbf16>, vector<64x4xf32> -> vector<64x4xf32>
    %19 = arith.addf %13, %18 : vector<64x4xf32>
    %20 = vector.extract_strided_slice %6 {offsets = [2, 0], sizes = [64, 1], strides = [1, 1]} : vector<80x1xf32> to vector<64x1xf32>
    %21 = arith.truncf %20 : vector<64x1xf32> to vector<64x1xbf16>
    %c2 = arith.constant 2 : index
    %c0_13 = arith.constant 0 : index
    %c0_14 = arith.constant 0 : index
    %22 = vector.load %arg5[%c2, %c0_13, %c0_14] : memref<7x1x4xbf16, #tpu.memory_space<vmem>>, vector<1x1x4xbf16>
    %23 = vector.shape_cast %22 : vector<1x1x4xbf16> to vector<1x4xbf16>
    %cst_15 = arith.constant dense<0.000000e+00> : vector<64x4xf32>
    %24 = tpu.matmul %21, %23, %cst_15 {dimension_numbers = #tpu.dot_dimension_numbers<[1], [0], [0], [1], [0, 0, 1, 1], [], []>} : vector<64x1xbf16>, vector<1x4xbf16>, vector<64x4xf32> -> vector<64x4xf32>
    %25 = arith.addf %19, %24 : vector<64x4xf32>
    %26 = vector.extract_strided_slice %6 {offsets = [3, 0], sizes = [64, 1], strides = [1, 1]} : vector<80x1xf32> to vector<64x1xf32>
    %27 = arith.truncf %26 : vector<64x1xf32> to vector<64x1xbf16>
    %c3 = arith.constant 3 : index
    %c0_16 = arith.constant 0 : index
    %c0_17 = arith.constant 0 : index
    %28 = vector.load %arg5[%c3, %c0_16, %c0_17] : memref<7x1x4xbf16, #tpu.memory_space<vmem>>, vector<1x1x4xbf16>
    %29 = vector.shape_cast %28 : vector<1x1x4xbf16> to vector<1x4xbf16>
    %cst_18 = arith.constant dense<0.000000e+00> : vector<64x4xf32>
    %30 = tpu.matmul %27, %29, %cst_18 {dimension_numbers = #tpu.dot_dimension_numbers<[1], [0], [0], [1], [0, 0, 1, 1], [], []>} : vector<64x1xbf16>, vector<1x4xbf16>, vector<64x4xf32> -> vector<64x4xf32>
    %31 = arith.addf %25, %30 : vector<64x4xf32>
    %32 = vector.extract_strided_slice %6 {offsets = [4, 0], sizes = [64, 1], strides = [1, 1]} : vector<80x1xf32> to vector<64x1xf32>
    %33 = arith.truncf %32 : vector<64x1xf32> to vector<64x1xbf16>
    %c4 = arith.constant 4 : index
    %c0_19 = arith.constant 0 : index
    %c0_20 = arith.constant 0 : index
    %34 = vector.load %arg5[%c4, %c0_19, %c0_20] : memref<7x1x4xbf16, #tpu.memory_space<vmem>>, vector<1x1x4xbf16>
    %35 = vector.shape_cast %34 : vector<1x1x4xbf16> to vector<1x4xbf16>
    %cst_21 = arith.constant dense<0.000000e+00> : vector<64x4xf32>
    %36 = tpu.matmul %33, %35, %cst_21 {dimension_numbers = #tpu.dot_dimension_numbers<[1], [0], [0], [1], [0, 0, 1, 1], [], []>} : vector<64x1xbf16>, vector<1x4xbf16>, vector<64x4xf32> -> vector<64x4xf32>
    %37 = arith.addf %31, %36 : vector<64x4xf32>
    %38 = vector.extract_strided_slice %6 {offsets = [5, 0], sizes = [64, 1], strides = [1, 1]} : vector<80x1xf32> to vector<64x1xf32>
    %39 = arith.truncf %38 : vector<64x1xf32> to vector<64x1xbf16>
    %c5 = arith.constant 5 : index
    %c0_22 = arith.constant 0 : index
    %c0_23 = arith.constant 0 : index
    %40 = vector.load %arg5[%c5, %c0_22, %c0_23] : memref<7x1x4xbf16, #tpu.memory_space<vmem>>, vector<1x1x4xbf16>
    %41 = vector.shape_cast %40 : vector<1x1x4xbf16> to vector<1x4xbf16>
    %cst_24 = arith.constant dense<0.000000e+00> : vector<64x4xf32>
    %42 = tpu.matmul %39, %41, %cst_24 {dimension_numbers = #tpu.dot_dimension_numbers<[1], [0], [0], [1], [0, 0, 1, 1], [], []>} : vector<64x1xbf16>, vector<1x4xbf16>, vector<64x4xf32> -> vector<64x4xf32>
    %43 = arith.addf %37, %42 : vector<64x4xf32>
    %44 = vector.extract_strided_slice %6 {offsets = [6, 0], sizes = [64, 1], strides = [1, 1]} : vector<80x1xf32> to vector<64x1xf32>
    %45 = arith.truncf %44 : vector<64x1xf32> to vector<64x1xbf16>
    %c6 = arith.constant 6 : index
    %c0_25 = arith.constant 0 : index
    %c0_26 = arith.constant 0 : index
    %46 = vector.load %arg5[%c6, %c0_25, %c0_26] : memref<7x1x4xbf16, #tpu.memory_space<vmem>>, vector<1x1x4xbf16>
    %47 = vector.shape_cast %46 : vector<1x1x4xbf16> to vector<1x4xbf16>
    %cst_27 = arith.constant dense<0.000000e+00> : vector<64x4xf32>
    %48 = tpu.matmul %45, %47, %cst_27 {dimension_numbers = #tpu.dot_dimension_numbers<[1], [0], [0], [1], [0, 0, 1, 1], [], []>} : vector<64x1xbf16>, vector<1x4xbf16>, vector<64x4xf32> -> vector<64x4xf32>
    %49 = arith.addf %43, %48 : vector<64x4xf32>
    %c0_28 = arith.constant 0 : index
    %c0_29 = arith.constant 0 : index
    %50 = vector.load %arg6[%c0_28, %c0_29] : memref<1x4xf32, #tpu.memory_space<vmem>>, vector<1x4xf32>
    %51 = vector.broadcast %50 : vector<1x4xf32> to vector<64x4xf32>
    %52 = arith.addf %49, %51 : vector<64x4xf32>
    %53 = arith.truncf %52 : vector<64x4xf32> to vector<64x4xbf16>
    %c0_30 = arith.constant 0 : index
    %c0_31 = arith.constant 0 : index
    %c0_32 = arith.constant 0 : index
    %54 = vector.load %arg7[%c0_30, %c0_31, %c0_32] : memref<1x64x4xbf16, #tpu.memory_space<vmem>>, vector<1x64x4xbf16>
    %55 = vector.shape_cast %54 : vector<1x64x4xbf16> to vector<64x4xbf16>
    %56 = vector.shape_cast %53 : vector<64x4xbf16> to vector<1x64x4xbf16>
    tpu.vector_store %arg7[%c0_30, %c0_31, %c0_32], %56 {strides = array<i32>} : memref<1x64x4xbf16, #tpu.memory_space<vmem>>, vector<1x64x4xbf16>,
    return
  }
  func.func @transform_0(%arg0: i32, %arg1: i32, %arg2: i32) -> (i32, i32, i32) {
    %c0_i32 = arith.constant 0 : i32
    %c0_i32_0 = arith.constant 0 : i32
    return %arg0, %arg1, %c0_i32 : i32, i32, i32
  }
  func.func @transform_1(%arg0: i32, %arg1: i32, %arg2: i32) -> (i32, i32, i32, i32) {
    %c0_i32 = arith.constant 0 : i32
    %c0_i32_0 = arith.constant 0 : i32
    %c0_i32_1 = arith.constant 0 : i32
    return %arg0, %arg1, %c0_i32, %c0_i32_0 : i32, i32, i32, i32
  }
  func.func @transform_2(%arg0: i32, %arg1: i32, %arg2: i32) -> (i32, i32, i32) {
    %c0_i32 = arith.constant 0 : i32
    %c0_i32_0 = arith.constant 0 : i32
    %c0_i32_1 = arith.constant 0 : i32
    return %c0_i32, %c0_i32_0, %arg2 : i32, i32, i32
  }
  func.func @transform_3(%arg0: i32, %arg1: i32, %arg2: i32) -> (i32, i32) {
    %c0_i32 = arith.constant 0 : i32
    %c0_i32_0 = arith.constant 0 : i32
    return %c0_i32, %arg2 : i32, i32
  }
  func.func @transform_4(%arg0: i32, %arg1: i32, %arg2: i32) -> (i32, i32, i32) {
    %c0_i32 = arith.constant 0 : i32
    return %arg0, %arg1, %arg2 : i32, i32, i32
  }
}

</mosaic_0001>

<llo_original>
// kernel: tpu_custom_call.1
$region0: #{tpu_custom_call.1}
  #allocation0 [shape = 'u32[]', space=smem, size = 0x4, offset = 0x4, fixed_abs, tag = 'smem constant byte address 0x4 - core index']
  #allocation1 [shape = 'u32[144,128]{1,0:T(1,128)}', space=vmem, size = 0x12000, scoped, tag = 'internal scratch']
  %s0 = inlined_call_operand.vmem [shape: bf16[2,80,1], index: 0, kind: input, shape index: {}]
  %s1 = inlined_call_operand.vmem [shape: bf16[2,1,16,1], index: 1, kind: input, shape index: {}]
  %s2 = inlined_call_operand.vmem [shape: bf16[7,1,4], index: 2, kind: input, shape index: {}]
  %s3 = inlined_call_operand.vmem [shape: f32[1,4], index: 3, kind: input, shape index: {}]
  %s4 = inlined_call_operand.vmem [shape: bf16[2,64,4], index: 4, kind: output, shape index: {}]
  %s5 = sld [smem:[#allocation0]]
  $region49: #{tpu_custom_call.1} parent=0
    _
  %s7 = ssub.s32 1, %s5
  %s8 = scalar_select 0, %s7, %s5
  loop: start=0, step=1, limit=4
  $region2: #{tpu_custom_call.1} parent=0 // loop_pre_header
    _
  $region3: #{tpu_custom_call.1} parent=0 // loop_header
    %s10 = sphi 0, %s14
    %p11 = scmp.ge.s32.totalorder %s10, 4
    %s17 = sphi 0, %s36
    %s18 = sphi 0, %s32
    %s19 = sphi 0, %s28
    %s20 = sphi 0, %s17
    %s21 = sphi 0, %s18
    %s22 = sphi 0, %s19
    %s23 = sphi 0, %s20
    %s24 = sphi 0, %s21
    %s25 = sphi 0, %s22
    %s41 = sphi 0, %s43
    %s44 = sphi 0, %s41
    %s45 = sphi 0, %s44
    %s61 = sphi 0, %s45
    %s69 = sphi 0, %s71
    %s72 = sphi 0, %s69
    %s73 = sphi 0, %s72
    %s89 = sphi 0, %s73
    %s95 = sphi 0, %s97
    %s98 = sphi 0, %s95
    %s99 = sphi 0, %s98
    %s115 = sphi 0, %s99
    %s121 = sphi 0, %s123
    %s124 = sphi 0, %s121
    %s125 = sphi 0, %s124
    %s141 = sphi 0, %s125
    %s151 = sphi 0, %s153
    %s154 = sphi 0, %s151
    %s155 = sphi 0, %s154
    %s171 = sphi 0, %s155
  $region4: #{tpu_custom_call.1} parent=0 // loop_header_branch
    %13 = sbr.rel (%p11) target = $region8
  $region5: #{tpu_custom_call.1} parent=0 // loop_body
    %s15 = ssub.s32 %s10, 1
    %s16 = ssub.s32 %s10, 2
    %s26 = sadd.s32 1, %s19
    %p27 = scmp.ge.s32.totalorder %s26, 1
    %s28 = scalar_select %p27, 0, %s26
    %s29 = sadd.s32 1, %s18
    %s30 = scalar_select %p27, %s29, %s18
    %p31 = scmp.ge.s32.totalorder %s30, 1
    %s32 = scalar_select %p31, 0, %s30
    %s33 = sadd.s32 1, %s17
    %s34 = scalar_select %p31, %s33, %s17
    %p35 = scmp.ge.s32.totalorder %s34, 2
    %s36 = scalar_select %p35, 0, %s34
    %s37 = ssub.s32 %s17, %s36
    %s38 = ssub.s32 %s18, %s32
    %s39 = sor.u32 %s37, %s38
    %p40 = scmp.eq.s32.totalorder %s39, 0
    %s42 = sadd.s32 %s41, 1
    %s43 = scalar_select %p40, %s41, %s42
    %p46 = pneg %p40
    %p47 = scmp.eq.s32.totalorder %s10, 1
    %p48 = por %p46, %p47
    %p49 = scmp.ne.s32.totalorder %s41, %s44
    %p50 = scmp.eq.s32.totalorder %s10, 0
    %p51 = por %p49, %p50
    %p52 = scmp.ne.s32.totalorder %s41, %s44
    %p53 = scmp.eq.s32.totalorder %s15, 1
    %p54 = por %p52, %p53
    %p55 = scmp.ne.s32.totalorder %s44, %s45
    %p56 = scmp.eq.s32.totalorder %s15, 0
    %p57 = por %p55, %p56
    %p58 = scmp.ne.s32.totalorder %s44, %s45
    %p59 = scmp.eq.s32.totalorder %s16, 1
    %p60 = por %p58, %p59
    %p62 = scmp.ne.s32.totalorder %s45, %s61
    %p63 = scmp.eq.s32.totalorder %s16, 0
    %p64 = por %p62, %p63
    %s65 = ssub.s32 %s17, %s36
    %s66 = ssub.s32 %s18, %s32
    %s67 = sor.u32 %s65, %s66
    %p68 = scmp.eq.s32.totalorder %s67, 0
    %s70 = sadd.s32 %s69, 1
    %s71 = scalar_select %p68, %s69, %s70
    %p74 = pneg %p68
    %p75 = scmp.eq.s32.totalorder %s10, 1
    %p76 = por %p74, %p75
    %p77 = scmp.ne.s32.totalorder %s69, %s72
    %p78 = scmp.eq.s32.totalorder %s10, 0
    %p79 = por %p77, %p78
    %p80 = scmp.ne.s32.totalorder %s69, %s72
    %p81 = scmp.eq.s32.totalorder %s15, 1
    %p82 = por %p80, %p81
    %p83 = scmp.ne.s32.totalorder %s72, %s73
    %p84 = scmp.eq.s32.totalorder %s15, 0
    %p85 = por %p83, %p84
    %p86 = scmp.ne.s32.totalorder %s72, %s73
    %p87 = scmp.eq.s32.totalorder %s16, 1
    %p88 = por %p86, %p87
    %p90 = scmp.ne.s32.totalorder %s73, %s89
    %p91 = scmp.eq.s32.totalorder %s16, 0
    %p92 = por %p90, %p91
    %s93 = ssub.s32 %s19, %s28
    %p94 = scmp.eq.s32.totalorder %s93, 0
    %s96 = sadd.s32 %s95, 1
    %s97 = scalar_select %p94, %s95, %s96
    %p100 = pneg %p94
    %p101 = scmp.eq.s32.totalorder %s10, 1
    %p102 = por %p100, %p101
    %p103 = scmp.ne.s32.totalorder %s95, %s98
    %p104 = scmp.eq.s32.totalorder %s10, 0
    %p105 = por %p103, %p104
    %p106 = scmp.ne.s32.totalorder %s95, %s98
    %p107 = scmp.eq.s32.totalorder %s15, 1
    %p108 = por %p106, %p107
    %p109 = scmp.ne.s32.totalorder %s98, %s99
    %p110 = scmp.eq.s32.totalorder %s15, 0
    %p111 = por %p109, %p110
    %p112 = scmp.ne.s32.totalorder %s98, %s99
    %p113 = scmp.eq.s32.totalorder %s16, 1
    %p114 = por %p112, %p113
    %p116 = scmp.ne.s32.totalorder %s99, %s115
    %p117 = scmp.eq.s32.totalorder %s16, 0
    %p118 = por %p116, %p117
    %s119 = ssub.s32 %s19, %s28
    %p120 = scmp.eq.s32.totalorder %s119, 0
    %s122 = sadd.s32 %s121, 1
    %s123 = scalar_select %p120, %s121, %s122
    %p126 = pneg %p120
    %p127 = scmp.eq.s32.totalorder %s10, 1
    %p128 = por %p126, %p127
    %p129 = scmp.ne.s32.totalorder %s121, %s124
    %p130 = scmp.eq.s32.totalorder %s10, 0
    %p131 = por %p129, %p130
    %p132 = scmp.ne.s32.totalorder %s121, %s124
    %p133 = scmp.eq.s32.totalorder %s15, 1
    %p134 = por %p132, %p133
    %p135 = scmp.ne.s32.totalorder %s124, %s125
    %p136 = scmp.eq.s32.totalorder %s15, 0
    %p137 = por %p135, %p136
    %p138 = scmp.ne.s32.totalorder %s124, %s125
    %p139 = scmp.eq.s32.totalorder %s16, 1
    %p140 = por %p138, %p139
    %p142 = scmp.ne.s32.totalorder %s125, %s141
    %p143 = scmp.eq.s32.totalorder %s16, 0
    %p144 = por %p142, %p143
    %s145 = ssub.s32 %s17, %s36
    %s146 = ssub.s32 %s18, %s32
    %s147 = sor.u32 %s145, %s146
    %s148 = ssub.s32 %s19, %s28
    %s149 = sor.u32 %s147, %s148
    %p150 = scmp.eq.s32.totalorder %s149, 0
    %s152 = sadd.s32 %s151, 1
    %s153 = scalar_select %p150, %s151, %s152
    %p156 = pneg %p150
    %p157 = scmp.eq.s32.totalorder %s10, 1
    %p158 = por %p156, %p157
    %p159 = scmp.ne.s32.totalorder %s151, %s154
    %p160 = scmp.eq.s32.totalorder %s10, 0
    %p161 = por %p159, %p160
    %p162 = scmp.ne.s32.totalorder %s151, %s154
    %p163 = scmp.eq.s32.totalorder %s15, 1
    %p164 = por %p162, %p163
    %p165 = scmp.ne.s32.totalorder %s154, %s155
    %p166 = scmp.eq.s32.totalorder %s15, 0
    %p167 = por %p165, %p166
    %p168 = scmp.ne.s32.totalorder %s154, %s155
    %p169 = scmp.eq.s32.totalorder %s16, 1
    %p170 = por %p168, %p169
    %p172 = scmp.ne.s32.totalorder %s155, %s171
    %p173 = scmp.eq.s32.totalorder %s16, 0
    %p174 = por %p172, %p173
    %p175 = scmp.le.s32.totalorder 1, %s10
    %p176 = scmp.lt.s32.totalorder %s10, 3
    %p177 = pnand %p175, %p176
    %p178 = pneg %p177
    // Predicated region
    $region9: #{tpu_custom_call.1} parent=5 // pred_check
      _
    $region10: #{tpu_custom_call.1} parent=5 // pred_check_branch
      %180 = sbr.rel (%p177) target = $region12
    $region11: #{tpu_custom_call.1} parent=5 // pred_region
      %s181 = ssub.s32 %s10, 1
      // Predicated region
      $region13: #{tpu_custom_call.1} parent=11 // pred_check
        %p182 = pneg %p111
      $region14: #{tpu_custom_call.1} parent=11 // pred_check_branch
        %184 = sbr.rel (%p182) target = $region16
      $region15: #{tpu_custom_call.1} parent=11 // pred_region
        %p185 = scmp.lt.s32.totalorder %s22, 0
        %s186 = scalar_select %p185, %s22, 0
        %s187 = scalar_lea.vmem %s2, %s186
      $region16: #{tpu_custom_call.1} parent=11 // pred_fallthru
        _
      // Predicated region
      $region17: #{tpu_custom_call.1} parent=11 // pred_check
        %p188 = pneg %p137
      $region18: #{tpu_custom_call.1} parent=11 // pred_check_branch
        %190 = sbr.rel (%p188) target = $region20
      $region19: #{tpu_custom_call.1} parent=11 // pred_region
        %p191 = scmp.lt.s32.totalorder %s22, 0
        %s192 = scalar_select %p191, %s22, 0
        %s193 = scalar_lea.vmem %s3, %s192
      $region20: #{tpu_custom_call.1} parent=11 // pred_fallthru
        _
    $region12: #{tpu_custom_call.1} parent=5 // pred_fallthru
      _
    %p194 = scmp.lt.s32.totalorder %s10, 2
    // Predicated region
    $region21: #{tpu_custom_call.1} parent=5 // pred_check
      %p195 = pneg %p194
    $region22: #{tpu_custom_call.1} parent=5 // pred_check_branch
      %197 = sbr.rel (%p195) target = $region24
    $region23: #{tpu_custom_call.1} parent=5 // pred_region
      // Predicated region
      $region25: #{tpu_custom_call.1} parent=23 // pred_check
        %p198 = pneg %p51
      $region26: #{tpu_custom_call.1} parent=23 // pred_check_branch
        %200 = sbr.rel (%p198) target = $region28
      $region27: #{tpu_custom_call.1} parent=23 // pred_region
        %s201 = smul.u32 8, %s18
        %s202 = ssub.s32 10, %s201
        %p203 = scmp.lt.s32.totalorder %s202, 8
        %s204 = scalar_select %p203, %s202, 8
        %s205 = smul.u32 64, %s204
        %p206 = scmp.lt.s32.totalorder %s17, 1
        %s207 = scalar_select %p206, %s17, 1
        %p208 = scmp.lt.s32.totalorder %s201, 9
        %s209 = scalar_select %p208, %s201, 9
        %s210 = smul.addr %s207, 10
        %s211 = sadd.s32 %s209, %s210
        %s212 = smul.addr %s211, 4
        %s213 = scalar_lea.vmem %s0, %s212
        %s214 = smul.u32 8, %s18
        %s215 = ssub.s32 10, %s214
        %p216 = scmp.lt.s32.totalorder %s215, 8
        %s217 = scalar_select %p216, %s215, 8
        %s218 = smul.u32 64, %s217
      $region28: #{tpu_custom_call.1} parent=23 // pred_fallthru
        _
      // Predicated region
      $region29: #{tpu_custom_call.1} parent=23 // pred_check
        %p219 = pneg %p79
      $region30: #{tpu_custom_call.1} parent=23 // pred_check_branch
        %221 = sbr.rel (%p219) target = $region32
      $region31: #{tpu_custom_call.1} parent=23 // pred_region
        %p222 = scmp.lt.s32.totalorder %s17, 1
        %s223 = scalar_select %p222, %s17, 1
        %p224 = scmp.lt.s32.totalorder %s18, 0
        %s225 = scalar_select %p224, %s18, 0
        %s226 = smul.addr %s225, 2
        %s227 = smul.addr %s223, 2
        %s228 = sadd.s32 %s226, %s227
        %s229 = smul.addr %s228, 4
        %s230 = scalar_lea.vmem %s1, %s229
      $region32: #{tpu_custom_call.1} parent=23 // pred_fallthru
        _
    $region24: #{tpu_custom_call.1} parent=5 // pred_fallthru
      _
    %p231 = scmp.le.s32.totalorder 1, %s10
    %p232 = scmp.lt.s32.totalorder %s10, 3
    %p233 = pnand %p231, %p232
    %p234 = pneg %p233
    // Predicated region
    $region33: #{tpu_custom_call.1} parent=5 // pred_check
      _
    $region34: #{tpu_custom_call.1} parent=5 // pred_check_branch
      %236 = sbr.rel (%p233) target = $region36
    $region35: #{tpu_custom_call.1} parent=5 // pred_region
      %s237 = ssub.s32 %s10, 1
      %s238 = smul.u32 8, %s21
      %s239 = ssub.s32 10, %s238
      %p240 = scmp.lt.s32.totalorder %s239, 8
      %s241 = scalar_select %p240, %s239, 8
      %s242 = smul.u32 64, %s241
      %p243 = scmp.lt.s32.totalorder %s20, 1
      %s244 = scalar_select %p243, %s20, 1
      %p245 = scmp.lt.s32.totalorder %s238, 9
      %s246 = scalar_select %p245, %s238, 9
      %s247 = smul.addr %s244, 10
      %s248 = sadd.s32 %s246, %s247
      %s249 = smul.addr %s248, 4
      %s250 = scalar_lea.vmem %s0, %s249
      %p251 = pneg %p57
      %p252 = pneg %p54
      %p253 = scmp.lt.s32.totalorder %s20, 1
      %s254 = scalar_select %p253, %s20, 1
      %p255 = scmp.lt.s32.totalorder %s21, 0
      %s256 = scalar_select %p255, %s21, 0
      %s257 = smul.addr %s256, 2
      %s258 = smul.addr %s254, 2
      %s259 = sadd.s32 %s257, %s258
      %s260 = smul.addr %s259, 4
      %s261 = scalar_lea.vmem %s1, %s260
      %p262 = pneg %p85
      %p263 = pneg %p82
      %p264 = scmp.lt.s32.totalorder %s22, 0
      %s265 = scalar_select %p264, %s22, 0
      %s266 = scalar_lea.vmem %s2, %s265
      %p267 = pneg %p111
      %p268 = pneg %p108
      %p269 = scmp.lt.s32.totalorder %s22, 0
      %s270 = scalar_select %p269, %s22, 0
      %s271 = scalar_lea.vmem %s3, %s270
      %p272 = pneg %p137
      %p273 = pneg %p134
      %p274 = pneg %p167
      %p275 = pneg %p164
      %s276 = smul.u32 8, %s21
      %p277 = scmp.lt.s32.totalorder %s20, 1
      %s278 = scalar_select %p277, %s20, 1
      %p279 = scmp.lt.s32.totalorder %s276, 7
      %s280 = scalar_select %p279, %s276, 7
      %p281 = scmp.lt.s32.totalorder %s22, 0
      %s282 = scalar_select %p281, %s22, 0
      %s283 = sadd.s32 %s282, %s280
      %s284 = smul.addr %s278, 8
      %s285 = sadd.s32 %s283, %s284
      %s286 = smul.addr %s285, 4
      %s287 = scalar_lea.vmem %s4, %s286
      %s288 = smul.u32 8, %s21
      %s289 = ssub.s32 10, %s288
      %p290 = scmp.lt.s32.totalorder %s289, 8
      %s291 = scalar_select %p290, %s289, 8
      %s292 = smul.u32 64, %s291
      %p293 = scmp.lt.s32.totalorder %s20, 1
      %s294 = scalar_select %p293, %s20, 1
      %p295 = scmp.lt.s32.totalorder %s288, 9
      %s296 = scalar_select %p295, %s288, 9
      %s297 = smul.addr %s294, 10
      %s298 = sadd.s32 %s296, %s297
      %s299 = smul.addr %s298, 4
      %s300 = scalar_lea.vmem %s0, %s299
      %s301 = smul.u32 8, %s21
      %s302 = ssub.s32 10, %s301
      %p303 = scmp.lt.s32.totalorder %s302, 8
      %s304 = scalar_select %p303, %s302, 8
      %s305 = smul.u32 64, %s304
      %p306 = scmp.lt.s32.totalorder %s20, 1
      %s307 = scalar_select %p306, %s20, 1
      %p308 = scmp.lt.s32.totalorder %s21, 0
      %s309 = scalar_select %p308, %s21, 0
      %s310 = smul.addr %s309, 2
      %s311 = smul.addr %s307, 2
      %s312 = sadd.s32 %s310, %s311
      %s313 = smul.addr %s312, 4
      %s314 = scalar_lea.vmem %s1, %s313
      %p315 = scmp.lt.s32.totalorder %s22, 0
      %s316 = scalar_select %p315, %s22, 0
      %s317 = scalar_lea.vmem %s2, %s316
      %p318 = scmp.lt.s32.totalorder %s22, 0
      %s319 = scalar_select %p318, %s22, 0
      %s320 = scalar_lea.vmem %s3, %s319
      %s321 = smul.u32 8, %s21
      %p322 = scmp.lt.s32.totalorder %s20, 1
      %s323 = scalar_select %p322, %s20, 1
      %p324 = scmp.lt.s32.totalorder %s321, 7
      %s325 = scalar_select %p324, %s321, 7
      %p326 = scmp.lt.s32.totalorder %s22, 0
      %s327 = scalar_select %p326, %s22, 0
      %s328 = sadd.s32 %s327, %s325
      %s329 = smul.addr %s323, 8
      %s330 = sadd.s32 %s328, %s329
      %s331 = smul.addr %s330, 4
      %s332 = scalar_lea.vmem %s4, %s331
      %s333 = smul.u32 8, %s21
      %v335 = vld [vmem:[%s300] sm:$0xf]
      %v336 = vld [vmem:[%s300 + $0x4] sm:$0xf]
      %v337 = vld [vmem:[%s300 + $0x8] sm:$0xf]
      %v338 = vld [vmem:[%s300 + $0xc] sm:$0xf]
      %v339 = vld [vmem:[%s300 + $0x10] sm:$0xf]
      %v340 = vld [vmem:[%s300 + $0x14] sm:$0xf]
      %v341 = vld [vmem:[%s300 + $0x18] sm:$0xf]
      %v342 = vld [vmem:[%s300 + $0x1c] sm:$0xf]
      %v343 = vunpack.c.l.bf16 %v335
      %v344 = vunpack.c.l.bf16 %v336
      %v345 = vunpack.c.l.bf16 %v337
      %v346 = vunpack.c.l.bf16 %v338
      %v347 = vunpack.c.l.bf16 %v339
      %v348 = vunpack.c.l.bf16 %v340
      %v349 = vunpack.c.l.bf16 %v341
      %v350 = vunpack.c.l.bf16 %v342
      %v351 = vld [vmem:[%s314] sm:$0xf]
      %v352 = vunpack.c.l.bf16 %v351
      %v353 = vpack.c.bf16 %v344, %v343
      %v354 = vpack.c.bf16 %v346, %v345
      %v355 = vpack.c.bf16 %v348, %v347
      %v356 = vpack.c.bf16 %v350, %v349
      %v357 = vld [vmem:[%s317] sm:$0x1]
      %v358 = vpack.c.bf16 %v352, %v352
      %s359 = scalar_lea.vmem %s317, 1
      %v360 = vld [vmem:[%s359] sm:$0x1]
      %vm361 = vsmask.f32 7424
      %v363 = vshrl.u32 %v353, 16
      %v365 = vshll.u32 %v353, 16
      %v367 = vrot.slane %v365, 1
      %v368 = vor.u32 %v363, %v367
      %v370 = vshll.u32 %v354, 16
      %v372 = vrot.slane %v370, 1
      %v373 = vsel %vm361, %v368, %v372
      %v374 = vshrl.u32 %v354, 16
      %v376 = vor.u32 %v374, %v372
      %v378 = vshll.u32 %v355, 16
      %v380 = vrot.slane %v378, 1
      %v381 = vsel %vm361, %v376, %v380
      %v382 = vshrl.u32 %v355, 16
      %v384 = vor.u32 %v382, %v380
      %v386 = vshll.u32 %v356, 16
      %v388 = vrot.slane %v386, 1
      %v389 = vsel %vm361, %v384, %v388
      %v390 = vshrl.u32 %v356, 16
      %v392 = vor.u32 %v390, %v388
      %v394 = vshll.u32 %v358, 16
      %v396 = vrot.slane %v394, 1
      %v397 = vsel %vm361, %v392, %v396
      %vm398 = vcmask 7168
      %v400 = vsel %vm398, %v373, 0
      %v403 = vsel %vm398, %v381, 0
      %v406 = vsel %vm398, %v389, 0
      %v409 = vsel %vm398, %v397, 0
      %vm411 = vcmask 1040384
      %v412 = vsel 0, 4294967295, 65535
      %v413 = vsel %vm411, %v412, 0
      %v415 = vand.u32 %v360, %v413
      %417 = vmatprep.subr.bf16.mxu0 0
      %418 = vmatpush1.bf16.msra.mxu0 %v415
      %419 = vmatprep.subr.bf16.mxu0 0
      %420 = vmatpush1.bf16.msra.mxu0 0
      %421 = vmatprep.subr.bf16.mxu0 0
      %422 = vmatpush1.bf16.msra.mxu0 0
      %423 = vmatprep.subr.bf16.mxu0 0
      %424 = vmatpush1.bf16.msra.mxu0 0
      %425 = vmatprep.subr.bf16.mxu0 0
      %426 = vmatpush1.bf16.msra.mxu0 0
      %427 = vmatprep.subr.bf16.mxu0 0
      %428 = vmatpush1.bf16.msra.mxu0 0
      %429 = vmatprep.subr.bf16.mxu0 0
      %430 = vmatpush1.bf16.msra.mxu0 0
      %431 = vmatprep.subr.bf16.mxu0 0
      %432 = vmatpush1.bf16.msra.mxu0 0
      %433 = vmatprep.subr.bf16.mxu0 0
      %434 = vmatpush1.bf16.msra.mxu0 0
      %435 = vmatprep.subr.bf16.mxu0 0
      %436 = vmatpush1.bf16.msra.mxu0 0
      %437 = vmatprep.subr.bf16.mxu0 0
      %438 = vmatpush1.bf16.msra.mxu0 0
      %439 = vmatprep.subr.bf16.mxu0 0
      %440 = vmatpush1.bf16.msra.mxu0 0
      %441 = vmatprep.subr.bf16.mxu0 0
      %442 = vmatpush1.bf16.msra.mxu0 0
      %443 = vmatprep.subr.bf16.mxu0 0
      %444 = vmatpush1.bf16.msra.mxu0 0
      %445 = vmatprep.subr.bf16.mxu0 0
      %446 = vmatpush1.bf16.msra.mxu0 0
      %447 = vmatprep.subr.bf16.mxu0 0
      %448 = vmatpush1.bf16.msra.mxu0 0
      %449 = vmatprep.mubr.bf16.mxu0 0
      %450 = vmatmul.mubr.bf16.gmra.mrb[0].mxu0 %v400
      %v451 = vpop.f32.mrb[0].mxu0
      %v452 = vadd.f32 0.0, %v451
      %v453 = vpop.f32.mrb[0].mxu0
      %v454 = vpop.f32.mrb[0].mxu0
      %v455 = vadd.f32 0.0, %v454
      %v456 = vpop.f32.mrb[0].mxu0
      %457 = vmatprep.mubr.bf16.mxu0 0
      %458 = vmatmul.mubr.bf16.gmra.mrb[0].mxu0 %v403
      %v459 = vpop.f32.mrb[0].mxu0
      %v460 = vadd.f32 0.0, %v459
      %v461 = vpop.f32.mrb[0].mxu0
      %v462 = vpop.f32.mrb[0].mxu0
      %v463 = vadd.f32 0.0, %v462
      %v464 = vpop.f32.mrb[0].mxu0
      %465 = vmatprep.mubr.bf16.mxu0 0
      %466 = vmatmul.mubr.bf16.gmra.mrb[0].mxu0 %v406
      %v467 = vpop.f32.mrb[0].mxu0
      %v468 = vadd.f32 0.0, %v467
      %v469 = vpop.f32.mrb[0].mxu0
      %v470 = vpop.f32.mrb[0].mxu0
      %v471 = vadd.f32 0.0, %v470
      %v472 = vpop.f32.mrb[0].mxu0
      %473 = vmatprep.mubr.bf16.mxu0 0
      %474 = vmatmul.mubr.bf16.gmra.mrb[0].mxu0 %v409
      %v475 = vpop.f32.mrb[0].mxu0
      %v476 = vadd.f32 0.0, %v475
      %v477 = vpop.f32.mrb[0].mxu0
      %v478 = vpop.f32.mrb[0].mxu0
      %v479 = vadd.f32 0.0, %v478
      %v480 = vpop.f32.mrb[0].mxu0
      %481 = vdwg.mxu0
      %v482 = vsel %vm398, %v353, 0
      %v484 = vsel %vm398, %v354, 0
      %v486 = vsel %vm398, %v355, 0
      %v488 = vsel %vm398, %v356, 0
      %v491 = vand.u32 %v357, %v413
      %493 = vmatprep.subr.bf16.mxu0 0
      %494 = vmatpush1.bf16.msra.mxu0 %v491
      %495 = vmatprep.subr.bf16.mxu0 0
      %496 = vmatpush1.bf16.msra.mxu0 0
      %497 = vmatprep.subr.bf16.mxu0 0
      %498 = vmatpush1.bf16.msra.mxu0 0
      %499 = vmatprep.subr.bf16.mxu0 0
      %500 = vmatpush1.bf16.msra.mxu0 0
      %501 = vmatprep.subr.bf16.mxu0 0
      %502 = vmatpush1.bf16.msra.mxu0 0
      %503 = vmatprep.subr.bf16.mxu0 0
      %504 = vmatpush1.bf16.msra.mxu0 0
      %505 = vmatprep.subr.bf16.mxu0 0
      %506 = vmatpush1.bf16.msra.mxu0 0
      %507 = vmatprep.subr.bf16.mxu0 0
      %508 = vmatpush1.bf16.msra.mxu0 0
      %509 = vmatprep.subr.bf16.mxu0 0
      %510 = vmatpush1.bf16.msra.mxu0 0
      %511 = vmatprep.subr.bf16.mxu0 0
      %512 = vmatpush1.bf16.msra.mxu0 0
      %513 = vmatprep.subr.bf16.mxu0 0
      %514 = vmatpush1.bf16.msra.mxu0 0
      %515 = vmatprep.subr.bf16.mxu0 0
      %516 = vmatpush1.bf16.msra.mxu0 0
      %517 = vmatprep.subr.bf16.mxu0 0
      %518 = vmatpush1.bf16.msra.mxu0 0
      %519 = vmatprep.subr.bf16.mxu0 0
      %520 = vmatpush1.bf16.msra.mxu0 0
      %521 = vmatprep.subr.bf16.mxu0 0
      %522 = vmatpush1.bf16.msra.mxu0 0
      %523 = vmatprep.subr.bf16.mxu0 0
      %524 = vmatpush1.bf16.msra.mxu0 0
      %525 = vmatprep.mubr.bf16.mxu0 0
      %526 = vmatmul.mubr.bf16.gmra.mrb[0].mxu0 %v482
      %v527 = vpop.f32.mrb[0].mxu0
      %v528 = vadd.f32 %v452, %v527
      %v529 = vpop.f32.mrb[0].mxu0
      %v530 = vpop.f32.mrb[0].mxu0
      %v531 = vadd.f32 %v455, %v530
      %v532 = vpop.f32.mrb[0].mxu0
      %533 = vmatprep.mubr.bf16.mxu0 0
      %534 = vmatmul.mubr.bf16.gmra.mrb[0].mxu0 %v484
      %v535 = vpop.f32.mrb[0].mxu0
      %v536 = vadd.f32 %v460, %v535
      %v537 = vpop.f32.mrb[0].mxu0
      %v538 = vpop.f32.mrb[0].mxu0
      %v539 = vadd.f32 %v463, %v538
      %v540 = vpop.f32.mrb[0].mxu0
      %541 = vmatprep.mubr.bf16.mxu0 0
      %542 = vmatmul.mubr.bf16.gmra.mrb[0].mxu0 %v486
      %v543 = vpop.f32.mrb[0].mxu0
      %v544 = vadd.f32 %v468, %v543
      %v545 = vpop.f32.mrb[0].mxu0
      %v546 = vpop.f32.mrb[0].mxu0
      %v547 = vadd.f32 %v471, %v546
      %v548 = vpop.f32.mrb[0].mxu0
      %549 = vmatprep.mubr.bf16.mxu0 0
      %550 = vmatmul.mubr.bf16.gmra.mrb[0].mxu0 %v488
      %v551 = vpop.f32.mrb[0].mxu0
      %v552 = vadd.f32 %v476, %v551
      %v553 = vpop.f32.mrb[0].mxu0
      %v554 = vpop.f32.mrb[0].mxu0
      %v555 = vadd.f32 %v479, %v554
      %v556 = vpop.f32.mrb[0].mxu0
      %557 = vdwg.mxu0
      %s558 = scalar_lea.vmem %s317, 2
      %v559 = vld [vmem:[%s558] sm:$0x1]
      %vm565 = vcmask 1046528
      %v566 = vrot.slane %v353, 1
      %v567 = vrot.slane %v354, 1
      %v568 = vsel %vm565, %v566, %v567
      %v569 = vrot.slane %v355, 1
      %v570 = vsel %vm565, %v567, %v569
      %v571 = vrot.slane %v356, 1
      %v572 = vsel %vm565, %v569, %v571
      %v573 = vrot.slane %v358, 1
      %v574 = vsel %vm565, %v571, %v573
      %v576 = vsel %vm398, %v568, 0
      %v579 = vsel %vm398, %v570, 0
      %v582 = vsel %vm398, %v572, 0
      %v585 = vsel %vm398, %v574, 0
      %v588 = vand.u32 %v559, %v413
      %590 = vmatprep.subr.bf16.mxu0 0
      %591 = vmatpush1.bf16.msra.mxu0 %v588
      %592 = vmatprep.subr.bf16.mxu0 0
      %593 = vmatpush1.bf16.msra.mxu0 0
      %594 = vmatprep.subr.bf16.mxu0 0
      %595 = vmatpush1.bf16.msra.mxu0 0
      %596 = vmatprep.subr.bf16.mxu0 0
      %597 = vmatpush1.bf16.msra.mxu0 0
      %598 = vmatprep.subr.bf16.mxu0 0
      %599 = vmatpush1.bf16.msra.mxu0 0
      %600 = vmatprep.subr.bf16.mxu0 0
      %601 = vmatpush1.bf16.msra.mxu0 0
      %602 = vmatprep.subr.bf16.mxu0 0
      %603 = vmatpush1.bf16.msra.mxu0 0
      %604 = vmatprep.subr.bf16.mxu0 0
      %605 = vmatpush1.bf16.msra.mxu0 0
      %606 = vmatprep.subr.bf16.mxu0 0
      %607 = vmatpush1.bf16.msra.mxu0 0
      %608 = vmatprep.subr.bf16.mxu0 0
      %609 = vmatpush1.bf16.msra.mxu0 0
      %610 = vmatprep.subr.bf16.mxu0 0
      %611 = vmatpush1.bf16.msra.mxu0 0
      %612 = vmatprep.subr.bf16.mxu0 0
      %613 = vmatpush1.bf16.msra.mxu0 0
      %614 = vmatprep.subr.bf16.mxu0 0
      %615 = vmatpush1.bf16.msra.mxu0 0
      %616 = vmatprep.subr.bf16.mxu0 0
      %617 = vmatpush1.bf16.msra.mxu0 0
      %618 = vmatprep.subr.bf16.mxu0 0
      %619 = vmatpush1.bf16.msra.mxu0 0
      %620 = vmatprep.subr.bf16.mxu0 0
      %621 = vmatpush1.bf16.msra.mxu0 0
      %622 = vmatprep.mubr.bf16.mxu0 0
      %623 = vmatmul.mubr.bf16.gmra.mrb[0].mxu0 %v576
      %v624 = vpop.f32.mrb[0].mxu0
      %v625 = vadd.f32 0.0, %v624
      %v626 = vpop.f32.mrb[0].mxu0
      %v627 = vpop.f32.mrb[0].mxu0
      %v628 = vadd.f32 0.0, %v627
      %v629 = vpop.f32.mrb[0].mxu0
      %630 = vmatprep.mubr.bf16.mxu0 0
      %631 = vmatmul.mubr.bf16.gmra.mrb[0].mxu0 %v579
      %v632 = vpop.f32.mrb[0].mxu0
      %v633 = vadd.f32 0.0, %v632
      %v634 = vpop.f32.mrb[0].mxu0
      %v635 = vpop.f32.mrb[0].mxu0
      %v636 = vadd.f32 0.0, %v635
      %v637 = vpop.f32.mrb[0].mxu0
      %638 = vmatprep.mubr.bf16.mxu0 0
      %639 = vmatmul.mubr.bf16.gmra.mrb[0].mxu0 %v582
      %v640 = vpop.f32.mrb[0].mxu0
      %v641 = vadd.f32 0.0, %v640
      %v642 = vpop.f32.mrb[0].mxu0
      %v643 = vpop.f32.mrb[0].mxu0
      %v644 = vadd.f32 0.0, %v643
      %v645 = vpop.f32.mrb[0].mxu0
      %646 = vmatprep.mubr.bf16.mxu0 0
      %647 = vmatmul.mubr.bf16.gmra.mrb[0].mxu0 %v585
      %v648 = vpop.f32.mrb[0].mxu0
      %v649 = vadd.f32 0.0, %v648
      %v650 = vpop.f32.mrb[0].mxu0
      %v651 = vpop.f32.mrb[0].mxu0
      %v652 = vadd.f32 0.0, %v651
      %v653 = vpop.f32.mrb[0].mxu0
      %654 = vdwg.mxu0
      %v655 = vadd.f32 %v528, %v625
      %v656 = vadd.f32 %v531, %v628
      %v657 = vadd.f32 %v536, %v633
      %v658 = vadd.f32 %v539, %v636
      %v659 = vadd.f32 %v544, %v641
      %v660 = vadd.f32 %v547, %v644
      %v661 = vadd.f32 %v552, %v649
      %v662 = vadd.f32 %v555, %v652
      %s663 = scalar_lea.vmem %s317, 3
      %v664 = vld [vmem:[%s663] sm:$0x1]
      %vm665 = vsmask.f32 6400
      %v666 = vrot.slane %v363, 1
      %v667 = vrot.slane %v365, 2
      %v668 = vor.u32 %v666, %v667
      %v669 = vrot.slane %v374, 1
      %v670 = vrot.slane %v370, 2
      %v671 = vor.u32 %v669, %v670
      %v672 = vsel %vm665, %v668, %v671
      %v673 = vrot.slane %v382, 1
      %v674 = vrot.slane %v378, 2
      %v675 = vor.u32 %v673, %v674
      %v676 = vsel %vm665, %v671, %v675
      %v677 = vrot.slane %v390, 1
      %v678 = vrot.slane %v386, 2
      %v679 = vor.u32 %v677, %v678
      %v680 = vsel %vm665, %v675, %v679
      %v681 = vshrl.u32 %v358, 16
      %v683 = vrot.slane %v681, 1
      %v684 = vrot.slane %v394, 2
      %v685 = vor.u32 %v683, %v684
      %v686 = vsel %vm665, %v679, %v685
      %v688 = vsel %vm398, %v672, 0
      %v691 = vsel %vm398, %v676, 0
      %v694 = vsel %vm398, %v680, 0
      %v697 = vsel %vm398, %v686, 0
      %v700 = vand.u32 %v664, %v413
      %702 = vmatprep.subr.bf16.mxu0 0
      %703 = vmatpush1.bf16.msra.mxu0 %v700
      %704 = vmatprep.subr.bf16.mxu0 0
      %705 = vmatpush1.bf16.msra.mxu0 0
      %706 = vmatprep.subr.bf16.mxu0 0
      %707 = vmatpush1.bf16.msra.mxu0 0
      %708 = vmatprep.subr.bf16.mxu0 0
      %709 = vmatpush1.bf16.msra.mxu0 0
      %710 = vmatprep.subr.bf16.mxu0 0
      %711 = vmatpush1.bf16.msra.mxu0 0
      %712 = vmatprep.subr.bf16.mxu0 0
      %713 = vmatpush1.bf16.msra.mxu0 0
      %714 = vmatprep.subr.bf16.mxu0 0
      %715 = vmatpush1.bf16.msra.mxu0 0
      %716 = vmatprep.subr.bf16.mxu0 0
      %717 = vmatpush1.bf16.msra.mxu0 0
      %718 = vmatprep.subr.bf16.mxu0 0
      %719 = vmatpush1.bf16.msra.mxu0 0
      %720 = vmatprep.subr.bf16.mxu0 0
      %721 = vmatpush1.bf16.msra.mxu0 0
      %722 = vmatprep.subr.bf16.mxu0 0
      %723 = vmatpush1.bf16.msra.mxu0 0
      %724 = vmatprep.subr.bf16.mxu0 0
      %725 = vmatpush1.bf16.msra.mxu0 0
      %726 = vmatprep.subr.bf16.mxu0 0
      %727 = vmatpush1.bf16.msra.mxu0 0
      %728 = vmatprep.subr.bf16.mxu0 0
      %729 = vmatpush1.bf16.msra.mxu0 0
      %730 = vmatprep.subr.bf16.mxu0 0
      %731 = vmatpush1.bf16.msra.mxu0 0
      %732 = vmatprep.subr.bf16.mxu0 0
      %733 = vmatpush1.bf16.msra.mxu0 0
      %734 = vmatprep.mubr.bf16.mxu0 0
      %735 = vmatmul.mubr.bf16.gmra.mrb[0].mxu0 %v688
      %v736 = vpop.f32.mrb[0].mxu0
      %v737 = vadd.f32 0.0, %v736
      %v738 = vpop.f32.mrb[0].mxu0
      %v739 = vpop.f32.mrb[0].mxu0
      %v740 = vadd.f32 0.0, %v739
      %v741 = vpop.f32.mrb[0].mxu0
      %742 = vmatprep.mubr.bf16.mxu0 0
      %743 = vmatmul.mubr.bf16.gmra.mrb[0].mxu0 %v691
      %v744 = vpop.f32.mrb[0].mxu0
      %v745 = vadd.f32 0.0, %v744
      %v746 = vpop.f32.mrb[0].mxu0
      %v747 = vpop.f32.mrb[0].mxu0
      %v748 = vadd.f32 0.0, %v747
      %v749 = vpop.f32.mrb[0].mxu0
      %750 = vmatprep.mubr.bf16.mxu0 0
      %751 = vmatmul.mubr.bf16.gmra.mrb[0].mxu0 %v694
      %v752 = vpop.f32.mrb[0].mxu0
      %v753 = vadd.f32 0.0, %v752
      %v754 = vpop.f32.mrb[0].mxu0
      %v755 = vpop.f32.mrb[0].mxu0
      %v756 = vadd.f32 0.0, %v755
      %v757 = vpop.f32.mrb[0].mxu0
      %758 = vmatprep.mubr.bf16.mxu0 0
      %759 = vmatmul.mubr.bf16.gmra.mrb[0].mxu0 %v697
      %v760 = vpop.f32.mrb[0].mxu0
      %v761 = vadd.f32 0.0, %v760
      %v762 = vpop.f32.mrb[0].mxu0
      %v763 = vpop.f32.mrb[0].mxu0
      %v764 = vadd.f32 0.0, %v763
      %v765 = vpop.f32.mrb[0].mxu0
      %766 = vdwg.mxu0
      %v767 = vadd.f32 %v655, %v737
      %v768 = vadd.f32 %v656, %v740
      %v769 = vadd.f32 %v657, %v745
      %v770 = vadd.f32 %v658, %v748
      %v771 = vadd.f32 %v659, %v753
      %v772 = vadd.f32 %v660, %v756
      %v773 = vadd.f32 %v661, %v761
      %v774 = vadd.f32 %v662, %v764
      %s775 = scalar_lea.vmem %s317, 4
      %v776 = vld [vmem:[%s775] sm:$0x1]
      %vm777 = vcmask 1045504
      %v778 = vrot.slane %v353, 2
      %v779 = vrot.slane %v354, 2
      %v780 = vsel %vm777, %v778, %v779
      %v781 = vrot.slane %v355, 2
      %v782 = vsel %vm777, %v779, %v781
      %v783 = vrot.slane %v356, 2
      %v784 = vsel %vm777, %v781, %v783
      %v785 = vrot.slane %v358, 2
      %v786 = vsel %vm777, %v783, %v785
      %v788 = vsel %vm398, %v780, 0
      %v791 = vsel %vm398, %v782, 0
      %v794 = vsel %vm398, %v784, 0
      %v797 = vsel %vm398, %v786, 0
      %v800 = vand.u32 %v776, %v413
      %802 = vmatprep.subr.bf16.mxu0 0
      %803 = vmatpush1.bf16.msra.mxu0 %v800
      %804 = vmatprep.subr.bf16.mxu0 0
      %805 = vmatpush1.bf16.msra.mxu0 0
      %806 = vmatprep.subr.bf16.mxu0 0
      %807 = vmatpush1.bf16.msra.mxu0 0
      %808 = vmatprep.subr.bf16.mxu0 0
      %809 = vmatpush1.bf16.msra.mxu0 0
      %810 = vmatprep.subr.bf16.mxu0 0
      %811 = vmatpush1.bf16.msra.mxu0 0
      %812 = vmatprep.subr.bf16.mxu0 0
      %813 = vmatpush1.bf16.msra.mxu0 0
      %814 = vmatprep.subr.bf16.mxu0 0
      %815 = vmatpush1.bf16.msra.mxu0 0
      %816 = vmatprep.subr.bf16.mxu0 0
      %817 = vmatpush1.bf16.msra.mxu0 0
      %818 = vmatprep.subr.bf16.mxu0 0
      %819 = vmatpush1.bf16.msra.mxu0 0
      %820 = vmatprep.subr.bf16.mxu0 0
      %821 = vmatpush1.bf16.msra.mxu0 0
      %822 = vmatprep.subr.bf16.mxu0 0
      %823 = vmatpush1.bf16.msra.mxu0 0
      %824 = vmatprep.subr.bf16.mxu0 0
      %825 = vmatpush1.bf16.msra.mxu0 0
      %826 = vmatprep.subr.bf16.mxu0 0
      %827 = vmatpush1.bf16.msra.mxu0 0
      %828 = vmatprep.subr.bf16.mxu0 0
      %829 = vmatpush1.bf16.msra.mxu0 0
      %830 = vmatprep.subr.bf16.mxu0 0
      %831 = vmatpush1.bf16.msra.mxu0 0
      %832 = vmatprep.subr.bf16.mxu0 0
      %833 = vmatpush1.bf16.msra.mxu0 0
      %834 = vmatprep.mubr.bf16.mxu0 0
      %835 = vmatmul.mubr.bf16.gmra.mrb[0].mxu0 %v788
      %v836 = vpop.f32.mrb[0].mxu0
      %v837 = vadd.f32 0.0, %v836
      %v838 = vpop.f32.mrb[0].mxu0
      %v839 = vpop.f32.mrb[0].mxu0
      %v840 = vadd.f32 0.0, %v839
      %v841 = vpop.f32.mrb[0].mxu0
      %842 = vmatprep.mubr.bf16.mxu0 0
      %843 = vmatmul.mubr.bf16.gmra.mrb[0].mxu0 %v791
      %v844 = vpop.f32.mrb[0].mxu0
      %v845 = vadd.f32 0.0, %v844
      %v846 = vpop.f32.mrb[0].mxu0
      %v847 = vpop.f32.mrb[0].mxu0
      %v848 = vadd.f32 0.0, %v847
      %v849 = vpop.f32.mrb[0].mxu0
      %850 = vmatprep.mubr.bf16.mxu0 0
      %851 = vmatmul.mubr.bf16.gmra.mrb[0].mxu0 %v794
      %v852 = vpop.f32.mrb[0].mxu0
      %v853 = vadd.f32 0.0, %v852
      %v854 = vpop.f32.mrb[0].mxu0
      %v855 = vpop.f32.mrb[0].mxu0
      %v856 = vadd.f32 0.0, %v855
      %v857 = vpop.f32.mrb[0].mxu0
      %858 = vmatprep.mubr.bf16.mxu0 0
      %859 = vmatmul.mubr.bf16.gmra.mrb[0].mxu0 %v797
      %v860 = vpop.f32.mrb[0].mxu0
      %v861 = vadd.f32 0.0, %v860
      %v862 = vpop.f32.mrb[0].mxu0
      %v863 = vpop.f32.mrb[0].mxu0
      %v864 = vadd.f32 0.0, %v863
      %v865 = vpop.f32.mrb[0].mxu0
      %866 = vdwg.mxu0
      %v867 = vadd.f32 %v767, %v837
      %v868 = vadd.f32 %v768, %v840
      %v869 = vadd.f32 %v769, %v845
      %v870 = vadd.f32 %v770, %v848
      %v871 = vadd.f32 %v771, %v853
      %v872 = vadd.f32 %v772, %v856
      %v873 = vadd.f32 %v773, %v861
      %v874 = vadd.f32 %v774, %v864
      %s875 = scalar_lea.vmem %s317, 5
      %v876 = vld [vmem:[%s875] sm:$0x1]
      %vm877 = vsmask.f32 5376
      %v878 = vrot.slane %v363, 2
      %v879 = vrot.slane %v365, 3
      %v880 = vor.u32 %v878, %v879
      %v881 = vrot.slane %v374, 2
      %v882 = vrot.slane %v370, 3
      %v883 = vor.u32 %v881, %v882
      %v884 = vsel %vm877, %v880, %v883
      %v885 = vrot.slane %v382, 2
      %v886 = vrot.slane %v378, 3
      %v887 = vor.u32 %v885, %v886
      %v888 = vsel %vm877, %v883, %v887
      %v889 = vrot.slane %v390, 2
      %v890 = vrot.slane %v386, 3
      %v891 = vor.u32 %v889, %v890
      %v892 = vsel %vm877, %v887, %v891
      %v893 = vrot.slane %v681, 2
      %v894 = vrot.slane %v394, 3
      %v895 = vor.u32 %v893, %v894
      %v896 = vsel %vm877, %v891, %v895
      %v898 = vsel %vm398, %v884, 0
      %v901 = vsel %vm398, %v888, 0
      %v904 = vsel %vm398, %v892, 0
      %v907 = vsel %vm398, %v896, 0
      %v910 = vand.u32 %v876, %v413
      %912 = vmatprep.subr.bf16.mxu0 0
      %913 = vmatpush1.bf16.msra.mxu0 %v910
      %914 = vmatprep.subr.bf16.mxu0 0
      %915 = vmatpush1.bf16.msra.mxu0 0
      %916 = vmatprep.subr.bf16.mxu0 0
      %917 = vmatpush1.bf16.msra.mxu0 0
      %918 = vmatprep.subr.bf16.mxu0 0
      %919 = vmatpush1.bf16.msra.mxu0 0
      %920 = vmatprep.subr.bf16.mxu0 0
      %921 = vmatpush1.bf16.msra.mxu0 0
      %922 = vmatprep.subr.bf16.mxu0 0
      %923 = vmatpush1.bf16.msra.mxu0 0
      %924 = vmatprep.subr.bf16.mxu0 0
      %925 = vmatpush1.bf16.msra.mxu0 0
      %926 = vmatprep.subr.bf16.mxu0 0
      %927 = vmatpush1.bf16.msra.mxu0 0
      %928 = vmatprep.subr.bf16.mxu0 0
      %929 = vmatpush1.bf16.msra.mxu0 0
      %930 = vmatprep.subr.bf16.mxu0 0
      %931 = vmatpush1.bf16.msra.mxu0 0
      %932 = vmatprep.subr.bf16.mxu0 0
      %933 = vmatpush1.bf16.msra.mxu0 0
      %934 = vmatprep.subr.bf16.mxu0 0
      %935 = vmatpush1.bf16.msra.mxu0 0
      %936 = vmatprep.subr.bf16.mxu0 0
      %937 = vmatpush1.bf16.msra.mxu0 0
      %938 = vmatprep.subr.bf16.mxu0 0
      %939 = vmatpush1.bf16.msra.mxu0 0
      %940 = vmatprep.subr.bf16.mxu0 0
      %941 = vmatpush1.bf16.msra.mxu0 0
      %942 = vmatprep.subr.bf16.mxu0 0
      %943 = vmatpush1.bf16.msra.mxu0 0
      %944 = vmatprep.mubr.bf16.mxu0 0
      %945 = vmatmul.mubr.bf16.gmra.mrb[0].mxu0 %v898
      %v946 = vpop.f32.mrb[0].mxu0
      %v947 = vadd.f32 0.0, %v946
      %v948 = vpop.f32.mrb[0].mxu0
      %v949 = vpop.f32.mrb[0].mxu0
      %v950 = vadd.f32 0.0, %v949
      %v951 = vpop.f32.mrb[0].mxu0
      %952 = vmatprep.mubr.bf16.mxu0 0
      %953 = vmatmul.mubr.bf16.gmra.mrb[0].mxu0 %v901
      %v954 = vpop.f32.mrb[0].mxu0
      %v955 = vadd.f32 0.0, %v954
      %v956 = vpop.f32.mrb[0].mxu0
      %v957 = vpop.f32.mrb[0].mxu0
      %v958 = vadd.f32 0.0, %v957
      %v959 = vpop.f32.mrb[0].mxu0
      %960 = vmatprep.mubr.bf16.mxu0 0
      %961 = vmatmul.mubr.bf16.gmra.mrb[0].mxu0 %v904
      %v962 = vpop.f32.mrb[0].mxu0
      %v963 = vadd.f32 0.0, %v962
      %v964 = vpop.f32.mrb[0].mxu0
      %v965 = vpop.f32.mrb[0].mxu0
      %v966 = vadd.f32 0.0, %v965
      %v967 = vpop.f32.mrb[0].mxu0
      %968 = vmatprep.mubr.bf16.mxu0 0
      %969 = vmatmul.mubr.bf16.gmra.mrb[0].mxu0 %v907
      %v970 = vpop.f32.mrb[0].mxu0
      %v971 = vadd.f32 0.0, %v970
      %v972 = vpop.f32.mrb[0].mxu0
      %v973 = vpop.f32.mrb[0].mxu0
      %v974 = vadd.f32 0.0, %v973
      %v975 = vpop.f32.mrb[0].mxu0
      %976 = vdwg.mxu0
      %v977 = vadd.f32 %v867, %v947
      %v978 = vadd.f32 %v868, %v950
      %v979 = vadd.f32 %v869, %v955
      %v980 = vadd.f32 %v870, %v958
      %v981 = vadd.f32 %v871, %v963
      %v982 = vadd.f32 %v872, %v966
      %v983 = vadd.f32 %v873, %v971
      %v984 = vadd.f32 %v874, %v974
      %s985 = scalar_lea.vmem %s317, 6
      %v986 = vld [vmem:[%s985] sm:$0x1]
      %vm987 = vcmask 1044480
      %v988 = vrot.slane %v353, 3
      %v989 = vrot.slane %v354, 3
      %v990 = vsel %vm987, %v988, %v989
      %v991 = vrot.slane %v355, 3
      %v992 = vsel %vm987, %v989, %v991
      %v993 = vrot.slane %v356, 3
      %v994 = vsel %vm987, %v991, %v993
      %v995 = vrot.slane %v358, 3
      %v996 = vsel %vm987, %v993, %v995
      %v998 = vsel %vm398, %v990, 0
      %v1001 = vsel %vm398, %v992, 0
      %v1004 = vsel %vm398, %v994, 0
      %v1007 = vsel %vm398, %v996, 0
      %v1010 = vand.u32 %v986, %v413
      %1012 = vmatprep.subr.bf16.mxu0 0
      %1013 = vmatpush1.bf16.msra.mxu0 %v1010
      %1014 = vmatprep.subr.bf16.mxu0 0
      %1015 = vmatpush1.bf16.msra.mxu0 0
      %1016 = vmatprep.subr.bf16.mxu0 0
      %1017 = vmatpush1.bf16.msra.mxu0 0
      %1018 = vmatprep.subr.bf16.mxu0 0
      %1019 = vmatpush1.bf16.msra.mxu0 0
      %1020 = vmatprep.subr.bf16.mxu0 0
      %1021 = vmatpush1.bf16.msra.mxu0 0
      %1022 = vmatprep.subr.bf16.mxu0 0
      %1023 = vmatpush1.bf16.msra.mxu0 0
      %1024 = vmatprep.subr.bf16.mxu0 0
      %1025 = vmatpush1.bf16.msra.mxu0 0
      %1026 = vmatprep.subr.bf16.mxu0 0
      %1027 = vmatpush1.bf16.msra.mxu0 0
      %1028 = vmatprep.subr.bf16.mxu0 0
      %1029 = vmatpush1.bf16.msra.mxu0 0
      %1030 = vmatprep.subr.bf16.mxu0 0
      %1031 = vmatpush1.bf16.msra.mxu0 0
      %1032 = vmatprep.subr.bf16.mxu0 0
      %1033 = vmatpush1.bf16.msra.mxu0 0
      %1034 = vmatprep.subr.bf16.mxu0 0
      %1035 = vmatpush1.bf16.msra.mxu0 0
      %1036 = vmatprep.subr.bf16.mxu0 0
      %1037 = vmatpush1.bf16.msra.mxu0 0
      %1038 = vmatprep.subr.bf16.mxu0 0
      %1039 = vmatpush1.bf16.msra.mxu0 0
      %1040 = vmatprep.subr.bf16.mxu0 0
      %1041 = vmatpush1.bf16.msra.mxu0 0
      %1042 = vmatprep.subr.bf16.mxu0 0
      %1043 = vmatpush1.bf16.msra.mxu0 0
      %1044 = vmatprep.mubr.bf16.mxu0 0
      %1045 = vmatmul.mubr.bf16.gmra.mrb[0].mxu0 %v998
      %v1046 = vpop.f32.mrb[0].mxu0
      %v1047 = vadd.f32 0.0, %v1046
      %v1048 = vpop.f32.mrb[0].mxu0
      %v1049 = vpop.f32.mrb[0].mxu0
      %v1050 = vadd.f32 0.0, %v1049
      %v1051 = vpop.f32.mrb[0].mxu0
      %1052 = vmatprep.mubr.bf16.mxu0 0
      %1053 = vmatmul.mubr.bf16.gmra.mrb[0].mxu0 %v1001
      %v1054 = vpop.f32.mrb[0].mxu0
      %v1055 = vadd.f32 0.0, %v1054
      %v1056 = vpop.f32.mrb[0].mxu0
      %v1057 = vpop.f32.mrb[0].mxu0
      %v1058 = vadd.f32 0.0, %v1057
      %v1059 = vpop.f32.mrb[0].mxu0
      %1060 = vmatprep.mubr.bf16.mxu0 0
      %1061 = vmatmul.mubr.bf16.gmra.mrb[0].mxu0 %v1004
      %v1062 = vpop.f32.mrb[0].mxu0
      %v1063 = vadd.f32 0.0, %v1062
      %v1064 = vpop.f32.mrb[0].mxu0
      %v1065 = vpop.f32.mrb[0].mxu0
      %v1066 = vadd.f32 0.0, %v1065
      %v1067 = vpop.f32.mrb[0].mxu0
      %1068 = vmatprep.mubr.bf16.mxu0 0
      %1069 = vmatmul.mubr.bf16.gmra.mrb[0].mxu0 %v1007
      %v1070 = vpop.f32.mrb[0].mxu0
      %v1071 = vadd.f32 0.0, %v1070
      %v1072 = vpop.f32.mrb[0].mxu0
      %v1073 = vpop.f32.mrb[0].mxu0
      %v1074 = vadd.f32 0.0, %v1073
      %v1075 = vpop.f32.mrb[0].mxu0
      %1076 = vdwg.mxu0
      %v1077 = vadd.f32 %v977, %v1047
      %v1078 = vadd.f32 %v978, %v1050
      %v1079 = vadd.f32 %v979, %v1055
      %v1080 = vadd.f32 %v980, %v1058
      %v1081 = vadd.f32 %v981, %v1063
      %v1082 = vadd.f32 %v982, %v1066
      %v1083 = vadd.f32 %v983, %v1071
      %v1084 = vadd.f32 %v984, %v1074
      %v1085 = vld [vmem:[%s320] sm:$0x1]
      %v1087 = vlaneseq
      %v1088 = vshrl.u32 %v1087, 7
      %v1089 = vsub.s32 0, %v1088
      %v1090 = vrot.slane %v1085, %v1089
      %v1092 = vadd.f32 %v1077, %v1090
      %v1093 = vadd.f32 %v1078, %v1090
      %v1094 = vadd.f32 %v1079, %v1090
      %v1095 = vadd.f32 %v1080, %v1090
      %v1096 = vadd.f32 %v1081, %v1090
      %v1097 = vadd.f32 %v1082, %v1090
      %v1098 = vadd.f32 %v1083, %v1090
      %v1099 = vadd.f32 %v1084, %v1090
      %v1100 = vpack.c.bf16 %v1093, %v1092
      %v1101 = vpack.c.bf16 %v1095, %v1094
      %v1102 = vpack.c.bf16 %v1097, %v1096
      %v1103 = vpack.c.bf16 %v1099, %v1098
      %v1108 = vunpack.c.l.b16 %v1100
      %v1109 = vunpack.c.h.b16 %v1100
      %v1110 = vunpack.c.l.b16 %v1101
      %v1111 = vunpack.c.h.b16 %v1101
      %v1112 = vunpack.c.l.b16 %v1102
      %v1113 = vunpack.c.h.b16 %v1102
      %v1114 = vunpack.c.l.b16 %v1103
      %v1115 = vunpack.c.h.b16 %v1103
      %v1116 = vpack.c.b16 %v1108, %v1108
      %v1117 = vpack.c.b16 %v1109, %v1109
      %v1118 = vpack.c.b16 %v1110, %v1110
      %v1119 = vpack.c.b16 %v1111, %v1111
      %v1120 = vpack.c.b16 %v1112, %v1112
      %v1121 = vpack.c.b16 %v1113, %v1113
      %v1122 = vpack.c.b16 %v1114, %v1114
      %v1123 = vpack.c.b16 %v1115, %v1115
      %vm1132 = vcmask 27648
      %1133 = vst.msk [vmem:[%s332] sm:$0xf] %vm1132, %v1116
      %1134 = vst.msk [vmem:[%s332 + $0x4] sm:$0xf] %vm1132, %v1117
      %1135 = vst.msk [vmem:[%s332 + $0x8] sm:$0xf] %vm1132, %v1118
      %1136 = vst.msk [vmem:[%s332 + $0xc] sm:$0xf] %vm1132, %v1119
      %1137 = vst.msk [vmem:[%s332 + $0x10] sm:$0xf] %vm1132, %v1120
      %1138 = vst.msk [vmem:[%s332 + $0x14] sm:$0xf] %vm1132, %v1121
      %1139 = vst.msk [vmem:[%s332 + $0x18] sm:$0xf] %vm1132, %v1122
      %1140 = vst.msk [vmem:[%s332 + $0x1c] sm:$0xf] %vm1132, %v1123
      %s1141 = smul.u32 8, %s21
      %p1142 = scmp.lt.s32.totalorder %s20, 1
      %s1143 = scalar_select %p1142, %s20, 1
      %p1144 = scmp.lt.s32.totalorder %s1141, 7
      %s1145 = scalar_select %p1144, %s1141, 7
      %p1146 = scmp.lt.s32.totalorder %s22, 0
      %s1147 = scalar_select %p1146, %s22, 0
      %s1148 = sadd.s32 %s1147, %s1145
      %s1149 = smul.addr %s1143, 8
      %s1150 = sadd.s32 %s1148, %s1149
      %s1151 = smul.addr %s1150, 4
      %s1152 = scalar_lea.vmem %s4, %s1151
      // Predicated region
      $region37: #{tpu_custom_call.1} parent=35 // pred_check
        %p1153 = pneg %p164
      $region38: #{tpu_custom_call.1} parent=35 // pred_check_branch
        %1155 = sbr.rel (%p1153) target = $region40
      $region39: #{tpu_custom_call.1} parent=35 // pred_region
        %s1156 = smul.u32 8, %s21
      $region40: #{tpu_custom_call.1} parent=35 // pred_fallthru
        _
    $region36: #{tpu_custom_call.1} parent=5 // pred_fallthru
      _
    %p1157 = scmp.le.s32.totalorder 2, %s10
    // Predicated region
    $region41: #{tpu_custom_call.1} parent=5 // pred_check
      %p1158 = pneg %p1157
    $region42: #{tpu_custom_call.1} parent=5 // pred_check_branch
      %1160 = sbr.rel (%p1158) target = $region44
    $region43: #{tpu_custom_call.1} parent=5 // pred_region
      %s1161 = ssub.s32 %s10, 2
      // Predicated region
      $region45: #{tpu_custom_call.1} parent=43 // pred_check
        %p1162 = pneg %p170
      $region46: #{tpu_custom_call.1} parent=43 // pred_check_branch
        %1164 = sbr.rel (%p1162) target = $region48
      $region47: #{tpu_custom_call.1} parent=43 // pred_region
        %s1165 = smul.u32 8, %s24
        %p1166 = scmp.lt.s32.totalorder %s23, 1
        %s1167 = scalar_select %p1166, %s23, 1
        %p1168 = scmp.lt.s32.totalorder %s1165, 7
        %s1169 = scalar_select %p1168, %s1165, 7
        %p1170 = scmp.lt.s32.totalorder %s25, 0
        %s1171 = scalar_select %p1170, %s25, 0
        %s1172 = sadd.s32 %s1171, %s1169
        %s1173 = smul.addr %s1167, 8
        %s1174 = sadd.s32 %s1172, %s1173
        %s1175 = smul.addr %s1174, 4
        %s1176 = scalar_lea.vmem %s4, %s1175
      $region48: #{tpu_custom_call.1} parent=43 // pred_fallthru
        _
    $region44: #{tpu_custom_call.1} parent=5 // pred_fallthru
      _
  $region6: #{tpu_custom_call.1} parent=0 // loop_footer
    %s14 = sadd.s32 1, %s10
  $region7: #{tpu_custom_call.1} parent=0 // loop_footer_branch
    %9 = sbr.rel target = $region3
  $region8: #{tpu_custom_call.1} parent=0 // loop_exit
    _

</llo_original>
